<compile_context>
chip_gen: v5e
topology: v5e:2x2
jax: 0.10.0
libtpu: 0.0.40
codegen_flags: <defaults>
</compile_context>

<pallas_src>
import functools

import jax
import jax.numpy as jnp
from jax import lax
from jax.experimental import pallas as pl
from jax.experimental.pallas import tpu as pltpu


# ---------------------------------------------------------------------------
# Hardware-aware helpers
# ---------------------------------------------------------------------------
def _vmem_capacity_bytes():
    try:
        info = pltpu.get_tpu_info()
        return int(getattr(info, "vmem_capacity_bytes", 64 * 1024 * 1024))
    except Exception:
        return 64 * 1024 * 1024  # conservative: v7x physical VMEM per core


def _pick_bc_tile(bc, h, w):
    """Lane-axis (B*C) tile.

    The lane dim of a block must be a multiple of 128 or equal the full array
    dim, so small B*C stays untiled (one grid step — fine, the data is tiny).
    For large B*C we pick the largest multiple of 128 that (a) divides bc,
    (b) keeps the double-buffered input block in the ~8-16 MiB sweet spot for
    the current chip generation, and (c) leaves >= 2 grid steps so both v7x
    TensorCores get work on the "parallel" axis.
    """
    vmem = _vmem_capacity_bytes()
    budget = min(16 * 1024 * 1024, vmem // 8)  # headroom for 2x-buffered in+out
    if bc % 128 != 0 or bc < 256:
        return bc
    per_lane_bytes = h * w * 4
    max_lanes = max(128, (budget // per_lane_bytes) // 128 * 128)
    tn = 128
    t = 128
    while t <= bc // 2:  # cap at bc//2: keep >= 2 grid steps (v7x megacore)
        if bc % t == 0 and t <= max_lanes:
            tn = t
        t += 128
    return tn


# ---------------------------------------------------------------------------
# Fused kernel: Gaussian-tap generation + depthwise valid conv + 0::sf pick.
# ---------------------------------------------------------------------------
def _fused_gaussian_blur_kernel(q_ref, x_ref, o_ref, k_ref, *, ks, sf):
    # q_ref : (4,)          f32 SMEM  -- row-major flattened 2x2 Q parameter
    # x_ref : (H,  W,  TN)  f32 VMEM  -- lane-dense over the B*C slices
    # o_ref : (HS, WS, TN)  f32 VMEM  -- strided ("valid" conv then 0::sf) out
    # k_ref : (1, ks, ks)   f32 VMEM  -- normalized Gaussian kernel (per step)
    hs, ws, _ = o_ref.shape

    # INV_SIGMA = M^T M with M = Q * [[1,0],[1,1]] = [[q00,0],[q10,q11]]
    q00 = q_ref[0]
    q10 = q_ref[2]
    q11 = q_ref[3]
    a = q00 * q00 + q10 * q10
    b = q10 * q11
    d = q11 * q11
    mu = float(ks // 2)  # shift='center'

    # (ks, ks) normalized kernel, written once per grid step into this step's
    # own HBM block (identical data, distinct blocks -> safe under "parallel").
    zi = lax.broadcasted_iota(jnp.int32, (ks, ks), 0).astype(jnp.float32) - mu
    zj = lax.broadcasted_iota(jnp.int32, (ks, ks), 1).astype(jnp.float32) - mu
    raw = jnp.exp(-0.5 * (a * zi * zi + 2.0 * b * zi * zj + d * zj * zj))
    k_ref[0] = raw / jnp.sum(raw)

    # Per-tap weights, recomputed as (1,1,1) splats (25 EUP exps are free).
    # Kept separate from the (ks,ks) vector above so every weight sits at the
    # vreg origin: plain splat-broadcast, no cross-lane/sublane extraction.
    weights = []
    total = None
    for dy in range(ks):
        for dx in range(ks):
            zi_s = float(dy) - mu
            zj_s = float(dx) - mu
            e = -0.5 * (zi_s * zi_s * a + 2.0 * zi_s * zj_s * b + zj_s * zj_s * d)
            wt = jnp.exp(jnp.full((1, 1, 1), e, jnp.float32))
            weights.append(wt)
            total = wt if total is None else total + wt
    inv_total = 1.0 / total  # exact (matches the f32 PyTorch reference)

    # Fused depthwise "valid" conv + 0::sf subsample: only the strided output
    # points are computed.  With B*C on the lane axis the tap offsets dy/dx
    # are major/sublane slices only (full-lane vector loads, no lane rotates),
    # so slicing the ref directly is cheap; the normalization is applied once
    # at the end instead of per tap.
    st = None if sf == 1 else sf
    acc = None
    t = 0
    for dy in range(ks):
        for dx in range(ks):
            xs = x_ref[pl.ds(dy, hs, stride=st), pl.ds(dx, ws, stride=st), :]
            term = xs * weights[t]
            acc = term if acc is None else acc + term
            t += 1
    o_ref[...] = acc * inv_total


# ---------------------------------------------------------------------------
# Wrapper: layout plumbing + tiling choice + single pallas_call.
# ---------------------------------------------------------------------------
def gaussian_kernel_forward(z, q, kernel_size, scale_factor):
    """Equivalent of GaussianKernel.forward: returns (X_r, kernel[ks, ks])."""
    b, c, h, w = z.shape
    ks, sf = kernel_size, scale_factor
    ho, wo = h - ks + 1, w - ks + 1
    hs, ws = -(-ho // sf), -(-wo // sf)
    bc = b * c

    # Lane-dense layout: B*C -> last (lane) axis. Pure layout plumbing.
    x = jnp.transpose(z.reshape(bc, h, w).astype(jnp.float32), (1, 2, 0))  # (H,W,BC)
    q_flat = q.reshape(-1).astype(jnp.float32)  # (4,)

    tn = _pick_bc_tile(bc, h, w)
    n_blocks = bc // tn
    vmem_cap = _vmem_capacity_bytes()

    # TODO(synk): add a halo-overlapped spatial (H) grid axis for very large
    # images so a single (H, W, tile) block never exceeds scoped VMEM on v7x.
    out, kern_all = pl.pallas_call(
        functools.partial(_fused_gaussian_blur_kernel, ks=ks, sf=sf),
        out_shape=(
            jax.ShapeDtypeStruct((hs, ws, bc), jnp.float32),
            jax.ShapeDtypeStruct((n_blocks, ks, ks), jnp.float32),
        ),
        grid=(n_blocks,),
        in_specs=[
            pl.BlockSpec(memory_space=pltpu.MemorySpace.SMEM),   # Q (4 scalars)
            pl.BlockSpec((h, w, tn), lambda i: (0, 0, i)),
        ],
        out_specs=(
            pl.BlockSpec((hs, ws, tn), lambda i: (0, 0, i)),
            pl.BlockSpec((1, ks, ks), lambda i: (i, 0, 0)),
        ),
        compiler_params=pltpu.CompilerParams(
            dimension_semantics=("parallel",),
            vmem_limit_bytes=min(vmem_cap // 2, 64 * 1024 * 1024),
        ),
    )(q_flat, x)

    x_r = jnp.transpose(out, (2, 0, 1)).reshape(b, c, hs, ws)
    return x_r, kern_all[0]


# ---------------------------------------------------------------------------
# Pure-JAX reference (mirrors the PyTorch code) for a correctness check.
# ---------------------------------------------------------------------------
def _reference_forward(z, q, ks, sf):
    mask = jnp.array([[1.0, 0.0], [1.0, 1.0]], jnp.float32)
    m = q * mask
    inv_sigma = m.T @ m
    mu = ks // 2
    xg, yg = jnp.meshgrid(jnp.arange(ks), jnp.arange(ks), indexing="ij")
    zz = jnp.stack([xg, yg], axis=-1).astype(jnp.float32) - mu  # (ks, ks, 2)
    quad = jnp.einsum("ijk,kl,ijl->ij", zz, inv_sigma, zz)
    raw = jnp.exp(-0.5 * quad)
    kern = raw / jnp.sum(raw)
    b, c, h, w = z.shape
    ho, wo = h - ks + 1, w - ks + 1
    out = jnp.zeros((b, c, ho, wo), jnp.float32)
    for dy in range(ks):
        for dx in range(ks):
            out = out + kern[dy, dx] * z[:, :, dy:dy + ho, dx:dx + wo]
    return out[:, :, ::sf, ::sf], kern


if __name__ == "__main__":
    KS = 5   # kernel_size
    SF = 2   # scale_factor
    B, C, H, W = 2, 4, 16, 16  # [batchsize, bands, block_height, block_width]

    key = jax.random.PRNGKey(0)
    kz, kq = jax.random.split(key)
    z = jax.random.normal(kz, (B, C, H, W), jnp.float32)
    # 2x2 learnable parameter (module initializes to 5*eye; a random value
    # exercises the full anisotropic math).
    q = 0.5 * jax.random.normal(kq, (2, 2), jnp.float32)

    fwd = jax.jit(functools.partial(gaussian_kernel_forward,
                                    kernel_size=KS, scale_factor=SF))
    x_r, kern = fwd(z, q)
    x_r, kern = jax.block_until_ready((x_r, kern))

    ho, wo = H - KS + 1, W - KS + 1
    hs, ws = -(-ho // SF), -(-wo // SF)
    assert x_r.shape == (B, C, hs, ws), x_r.shape
    assert kern.shape == (KS, KS), kern.shape
    assert bool(jnp.all(jnp.isfinite(x_r))) and bool(jnp.all(jnp.isfinite(kern)))

    x_ref_, k_ref_ = _reference_forward(z, q, KS, SF)
    assert jnp.allclose(kern, k_ref_, rtol=1e-5, atol=1e-6)
    assert jnp.allclose(x_r, x_ref_, rtol=1e-4, atol=1e-5)

    print("KERNEL_OK")
</pallas_src>

<mosaic_0001>
module attributes {stable_mosaic.version = 11 : i64} {
  func.func @_fused_gaussian_blur_kernel(%arg0: i32, %arg1: memref<4xf32, #tpu.memory_space<smem>>, %arg2: memref<16x16x8xf32, #tpu.memory_space<vmem>>, %arg3: memref<6x6x8xf32, #tpu.memory_space<vmem>>, %arg4: memref<1x5x5xf32, #tpu.memory_space<vmem>>) attributes {dimension_semantics = [#tpu.dimension_semantics<parallel>], iteration_bounds = array<i64: 1>, scalar_prefetch = 0 : i64, scratch_operands = 0 : i64, tpu.core_type = #tpu.core_type<tc>, window_params = [{transform_indices = @transform_0, window_bounds = array<i64: 4>}, {transform_indices = @transform_1, window_bounds = array<i64: 16, 16, 8>}, {transform_indices = @transform_2, window_bounds = array<i64: 6, 6, 8>}, {transform_indices = @transform_3, window_bounds = array<i64: 1, 5, 5>}]} {
    %c0 = arith.constant 0 : index
    %0 = memref.load %arg1[%c0] : memref<4xf32, #tpu.memory_space<smem>>
    %c2 = arith.constant 2 : index
    %1 = memref.load %arg1[%c2] : memref<4xf32, #tpu.memory_space<smem>>
    %c3 = arith.constant 3 : index
    %2 = memref.load %arg1[%c3] : memref<4xf32, #tpu.memory_space<smem>>
    %3 = arith.mulf %0, %0 : f32
    %4 = arith.mulf %1, %1 : f32
    %5 = arith.addf %3, %4 : f32
    %6 = arith.mulf %1, %2 : f32
    %7 = arith.mulf %2, %2 : f32
    %8 = tpu.iota {dimensions = array<i32: 0>} : vector<5x5xi32>
    %9 = arith.sitofp %8 : vector<5x5xi32> to vector<5x5xf32>
    %cst = arith.constant 2.000000e+00 : f32
    %10 = vector.broadcast %cst : f32 to vector<5x5xf32>
    %11 = arith.subf %9, %10 : vector<5x5xf32>
    %12 = tpu.iota {dimensions = array<i32: 1>} : vector<5x5xi32>
    %13 = arith.sitofp %12 : vector<5x5xi32> to vector<5x5xf32>
    %cst_0 = arith.constant 2.000000e+00 : f32
    %14 = vector.broadcast %cst_0 : f32 to vector<5x5xf32>
    %15 = arith.subf %13, %14 : vector<5x5xf32>
    %16 = vector.broadcast %5 : f32 to vector<5x5xf32>
    %17 = arith.mulf %16, %11 : vector<5x5xf32>
    %18 = arith.mulf %17, %11 : vector<5x5xf32>
    %cst_1 = arith.constant 2.000000e+00 : f32
    %19 = arith.mulf %cst_1, %6 : f32
    %20 = vector.broadcast %19 : f32 to vector<5x5xf32>
    %21 = arith.mulf %20, %11 : vector<5x5xf32>
    %22 = arith.mulf %21, %15 : vector<5x5xf32>
    %23 = arith.addf %18, %22 : vector<5x5xf32>
    %24 = vector.broadcast %7 : f32 to vector<5x5xf32>
    %25 = arith.mulf %24, %15 : vector<5x5xf32>
    %26 = arith.mulf %25, %15 : vector<5x5xf32>
    %27 = arith.addf %23, %26 : vector<5x5xf32>
    %cst_2 = arith.constant -5.000000e-01 : f32
    %28 = vector.broadcast %cst_2 : f32 to vector<5x5xf32>
    %29 = arith.mulf %28, %27 : vector<5x5xf32>
    %30 = math.exp %29 : vector<5x5xf32>
    %31 = vector.shape_cast %30 : vector<5x5xf32> to vector<1x5x5xf32>
    %cst_3 = arith.constant dense<0.000000e+00> : vector<1xf32>
    %32 = vector.multi_reduction <add>, %31, %cst_3 [1, 2] : vector<1x5x5xf32> to vector<1xf32>
    %33 = vector.shape_cast %32 : vector<1xf32> to vector<1x1x1xf32>
    %34 = vector.extract %33[0, 0, 0] : f32 from vector<1x1x1xf32>
    %35 = vector.broadcast %34 : f32 to vector<5x5xf32>
    %36 = arith.divf %30, %35 : vector<5x5xf32>
    %c0_4 = arith.constant 0 : index
    %c0_5 = arith.constant 0 : index
    %c0_6 = arith.constant 0 : index
    %37 = vector.load %arg4[%c0_4, %c0_5, %c0_6] : memref<1x5x5xf32, #tpu.memory_space<vmem>>, vector<1x5x5xf32>
    %38 = vector.shape_cast %37 : vector<1x5x5xf32> to vector<5x5xf32>
    %39 = vector.shape_cast %36 : vector<5x5xf32> to vector<1x5x5xf32>
    tpu.vector_store %arg4[%c0_4, %c0_5, %c0_6], %39 {strides = array<i32>} : memref<1x5x5xf32, #tpu.memory_space<vmem>>, vector<1x5x5xf32>,
    %cst_7 = arith.constant 4.000000e+00 : f32
    %40 = arith.mulf %cst_7, %5 : f32
    %cst_8 = arith.constant 8.000000e+00 : f32
    %41 = arith.mulf %cst_8, %6 : f32
    %42 = arith.addf %40, %41 : f32
    %cst_9 = arith.constant 4.000000e+00 : f32
    %43 = arith.mulf %cst_9, %7 : f32
    %44 = arith.addf %42, %43 : f32
    %cst_10 = arith.constant -5.000000e-01 : f32
    %45 = arith.mulf %cst_10, %44 : f32
    %46 = vector.broadcast %45 : f32 to vector<1x1x1xf32>
    %47 = math.exp %46 : vector<1x1x1xf32>
    %cst_11 = arith.constant 4.000000e+00 : f32
    %48 = arith.mulf %cst_11, %5 : f32
    %cst_12 = arith.constant 4.000000e+00 : f32
    %49 = arith.mulf %cst_12, %6 : f32
    %50 = arith.addf %48, %49 : f32
    %cst_13 = arith.constant 1.000000e+00 : f32
    %51 = arith.mulf %cst_13, %7 : f32
    %52 = arith.addf %50, %51 : f32
    %cst_14 = arith.constant -5.000000e-01 : f32
    %53 = arith.mulf %cst_14, %52 : f32
    %54 = vector.broadcast %53 : f32 to vector<1x1x1xf32>
    %55 = math.exp %54 : vector<1x1x1xf32>
    %56 = arith.addf %47, %55 : vector<1x1x1xf32>
    %cst_15 = arith.constant 4.000000e+00 : f32
    %57 = arith.mulf %cst_15, %5 : f32
    %cst_16 = arith.constant -0.000000e+00 : f32
    %58 = arith.mulf %cst_16, %6 : f32
    %59 = arith.addf %57, %58 : f32
    %cst_17 = arith.constant 0.000000e+00 : f32
    %60 = arith.mulf %cst_17, %7 : f32
    %61 = arith.addf %59, %60 : f32
    %cst_18 = arith.constant -5.000000e-01 : f32
    %62 = arith.mulf %cst_18, %61 : f32
    %63 = vector.broadcast %62 : f32 to vector<1x1x1xf32>
    %64 = math.exp %63 : vector<1x1x1xf32>
    %65 = arith.addf %56, %64 : vector<1x1x1xf32>
    %cst_19 = arith.constant 4.000000e+00 : f32
    %66 = arith.mulf %cst_19, %5 : f32
    %cst_20 = arith.constant -4.000000e+00 : f32
    %67 = arith.mulf %cst_20, %6 : f32
    %68 = arith.addf %66, %67 : f32
    %cst_21 = arith.constant 1.000000e+00 : f32
    %69 = arith.mulf %cst_21, %7 : f32
    %70 = arith.addf %68, %69 : f32
    %cst_22 = arith.constant -5.000000e-01 : f32
    %71 = arith.mulf %cst_22, %70 : f32
    %72 = vector.broadcast %71 : f32 to vector<1x1x1xf32>
    %73 = math.exp %72 : vector<1x1x1xf32>
    %74 = arith.addf %65, %73 : vector<1x1x1xf32>
    %cst_23 = arith.constant 4.000000e+00 : f32
    %75 = arith.mulf %cst_23, %5 : f32
    %cst_24 = arith.constant -8.000000e+00 : f32
    %76 = arith.mulf %cst_24, %6 : f32
    %77 = arith.addf %75, %76 : f32
    %cst_25 = arith.constant 4.000000e+00 : f32
    %78 = arith.mulf %cst_25, %7 : f32
    %79 = arith.addf %77, %78 : f32
    %cst_26 = arith.constant -5.000000e-01 : f32
    %80 = arith.mulf %cst_26, %79 : f32
    %81 = vector.broadcast %80 : f32 to vector<1x1x1xf32>
    %82 = math.exp %81 : vector<1x1x1xf32>
    %83 = arith.addf %74, %82 : vector<1x1x1xf32>
    %cst_27 = arith.constant 1.000000e+00 : f32
    %84 = arith.mulf %cst_27, %5 : f32
    %cst_28 = arith.constant 4.000000e+00 : f32
    %85 = arith.mulf %cst_28, %6 : f32
    %86 = arith.addf %84, %85 : f32
    %cst_29 = arith.constant 4.000000e+00 : f32
    %87 = arith.mulf %cst_29, %7 : f32
    %88 = arith.addf %86, %87 : f32
    %cst_30 = arith.constant -5.000000e-01 : f32
    %89 = arith.mulf %cst_30, %88 : f32
    %90 = vector.broadcast %89 : f32 to vector<1x1x1xf32>
    %91 = math.exp %90 : vector<1x1x1xf32>
    %92 = arith.addf %83, %91 : vector<1x1x1xf32>
    %cst_31 = arith.constant 1.000000e+00 : f32
    %93 = arith.mulf %cst_31, %5 : f32
    %cst_32 = arith.constant 2.000000e+00 : f32
    %94 = arith.mulf %cst_32, %6 : f32
    %95 = arith.addf %93, %94 : f32
    %cst_33 = arith.constant 1.000000e+00 : f32
    %96 = arith.mulf %cst_33, %7 : f32
    %97 = arith.addf %95, %96 : f32
    %cst_34 = arith.constant -5.000000e-01 : f32
    %98 = arith.mulf %cst_34, %97 : f32
    %99 = vector.broadcast %98 : f32 to vector<1x1x1xf32>
    %100 = math.exp %99 : vector<1x1x1xf32>
    %101 = arith.addf %92, %100 : vector<1x1x1xf32>
    %cst_35 = arith.constant 1.000000e+00 : f32
    %102 = arith.mulf %cst_35, %5 : f32
    %cst_36 = arith.constant -0.000000e+00 : f32
    %103 = arith.mulf %cst_36, %6 : f32
    %104 = arith.addf %102, %103 : f32
    %cst_37 = arith.constant 0.000000e+00 : f32
    %105 = arith.mulf %cst_37, %7 : f32
    %106 = arith.addf %104, %105 : f32
    %cst_38 = arith.constant -5.000000e-01 : f32
    %107 = arith.mulf %cst_38, %106 : f32
    %108 = vector.broadcast %107 : f32 to vector<1x1x1xf32>
    %109 = math.exp %108 : vector<1x1x1xf32>
    %110 = arith.addf %101, %109 : vector<1x1x1xf32>
    %cst_39 = arith.constant 1.000000e+00 : f32
    %111 = arith.mulf %cst_39, %5 : f32
    %cst_40 = arith.constant -2.000000e+00 : f32
    %112 = arith.mulf %cst_40, %6 : f32
    %113 = arith.addf %111, %112 : f32
    %cst_41 = arith.constant 1.000000e+00 : f32
    %114 = arith.mulf %cst_41, %7 : f32
    %115 = arith.addf %113, %114 : f32
    %cst_42 = arith.constant -5.000000e-01 : f32
    %116 = arith.mulf %cst_42, %115 : f32
    %117 = vector.broadcast %116 : f32 to vector<1x1x1xf32>
    %118 = math.exp %117 : vector<1x1x1xf32>
    %119 = arith.addf %110, %118 : vector<1x1x1xf32>
    %cst_43 = arith.constant 1.000000e+00 : f32
    %120 = arith.mulf %cst_43, %5 : f32
    %cst_44 = arith.constant -4.000000e+00 : f32
    %121 = arith.mulf %cst_44, %6 : f32
    %122 = arith.addf %120, %121 : f32
    %cst_45 = arith.constant 4.000000e+00 : f32
    %123 = arith.mulf %cst_45, %7 : f32
    %124 = arith.addf %122, %123 : f32
    %cst_46 = arith.constant -5.000000e-01 : f32
    %125 = arith.mulf %cst_46, %124 : f32
    %126 = vector.broadcast %125 : f32 to vector<1x1x1xf32>
    %127 = math.exp %126 : vector<1x1x1xf32>
    %128 = arith.addf %119, %127 : vector<1x1x1xf32>
    %cst_47 = arith.constant 0.000000e+00 : f32
    %129 = arith.mulf %cst_47, %5 : f32
    %cst_48 = arith.constant -0.000000e+00 : f32
    %130 = arith.mulf %cst_48, %6 : f32
    %131 = arith.addf %129, %130 : f32
    %cst_49 = arith.constant 4.000000e+00 : f32
    %132 = arith.mulf %cst_49, %7 : f32
    %133 = arith.addf %131, %132 : f32
    %cst_50 = arith.constant -5.000000e-01 : f32
    %134 = arith.mulf %cst_50, %133 : f32
    %135 = vector.broadcast %134 : f32 to vector<1x1x1xf32>
    %136 = math.exp %135 : vector<1x1x1xf32>
    %137 = arith.addf %128, %136 : vector<1x1x1xf32>
    %cst_51 = arith.constant 0.000000e+00 : f32
    %138 = arith.mulf %cst_51, %5 : f32
    %cst_52 = arith.constant -0.000000e+00 : f32
    %139 = arith.mulf %cst_52, %6 : f32
    %140 = arith.addf %138, %139 : f32
    %cst_53 = arith.constant 1.000000e+00 : f32
    %141 = arith.mulf %cst_53, %7 : f32
    %142 = arith.addf %140, %141 : f32
    %cst_54 = arith.constant -5.000000e-01 : f32
    %143 = arith.mulf %cst_54, %142 : f32
    %144 = vector.broadcast %143 : f32 to vector<1x1x1xf32>
    %145 = math.exp %144 : vector<1x1x1xf32>
    %146 = arith.addf %137, %145 : vector<1x1x1xf32>
    %cst_55 = arith.constant 0.000000e+00 : f32
    %147 = arith.mulf %cst_55, %5 : f32
    %cst_56 = arith.constant 0.000000e+00 : f32
    %148 = arith.mulf %cst_56, %6 : f32
    %149 = arith.addf %147, %148 : f32
    %cst_57 = arith.constant 0.000000e+00 : f32
    %150 = arith.mulf %cst_57, %7 : f32
    %151 = arith.addf %149, %150 : f32
    %cst_58 = arith.constant -5.000000e-01 : f32
    %152 = arith.mulf %cst_58, %151 : f32
    %153 = vector.broadcast %152 : f32 to vector<1x1x1xf32>
    %154 = math.exp %153 : vector<1x1x1xf32>
    %155 = arith.addf %146, %154 : vector<1x1x1xf32>
    %cst_59 = arith.constant 0.000000e+00 : f32
    %156 = arith.mulf %cst_59, %5 : f32
    %cst_60 = arith.constant 0.000000e+00 : f32
    %157 = arith.mulf %cst_60, %6 : f32
    %158 = arith.addf %156, %157 : f32
    %cst_61 = arith.constant 1.000000e+00 : f32
    %159 = arith.mulf %cst_61, %7 : f32
    %160 = arith.addf %158, %159 : f32
    %cst_62 = arith.constant -5.000000e-01 : f32
    %161 = arith.mulf %cst_62, %160 : f32
    %162 = vector.broadcast %161 : f32 to vector<1x1x1xf32>
    %163 = math.exp %162 : vector<1x1x1xf32>
    %164 = arith.addf %155, %163 : vector<1x1x1xf32>
    %cst_63 = arith.constant 0.000000e+00 : f32
    %165 = arith.mulf %cst_63, %5 : f32
    %cst_64 = arith.constant 0.000000e+00 : f32
    %166 = arith.mulf %cst_64, %6 : f32
    %167 = arith.addf %165, %166 : f32
    %cst_65 = arith.constant 4.000000e+00 : f32
    %168 = arith.mulf %cst_65, %7 : f32
    %169 = arith.addf %167, %168 : f32
    %cst_66 = arith.constant -5.000000e-01 : f32
    %170 = arith.mulf %cst_66, %169 : f32
    %171 = vector.broadcast %170 : f32 to vector<1x1x1xf32>
    %172 = math.exp %171 : vector<1x1x1xf32>
    %173 = arith.addf %164, %172 : vector<1x1x1xf32>
    %cst_67 = arith.constant 1.000000e+00 : f32
    %174 = arith.mulf %cst_67, %5 : f32
    %cst_68 = arith.constant -4.000000e+00 : f32
    %175 = arith.mulf %cst_68, %6 : f32
    %176 = arith.addf %174, %175 : f32
    %cst_69 = arith.constant 4.000000e+00 : f32
    %177 = arith.mulf %cst_69, %7 : f32
    %178 = arith.addf %176, %177 : f32
    %cst_70 = arith.constant -5.000000e-01 : f32
    %179 = arith.mulf %cst_70, %178 : f32
    %180 = vector.broadcast %179 : f32 to vector<1x1x1xf32>
    %181 = math.exp %180 : vector<1x1x1xf32>
    %182 = arith.addf %173, %181 : vector<1x1x1xf32>
    %cst_71 = arith.constant 1.000000e+00 : f32
    %183 = arith.mulf %cst_71, %5 : f32
    %cst_72 = arith.constant -2.000000e+00 : f32
    %184 = arith.mulf %cst_72, %6 : f32
    %185 = arith.addf %183, %184 : f32
    %cst_73 = arith.constant 1.000000e+00 : f32
    %186 = arith.mulf %cst_73, %7 : f32
    %187 = arith.addf %185, %186 : f32
    %cst_74 = arith.constant -5.000000e-01 : f32
    %188 = arith.mulf %cst_74, %187 : f32
    %189 = vector.broadcast %188 : f32 to vector<1x1x1xf32>
    %190 = math.exp %189 : vector<1x1x1xf32>
    %191 = arith.addf %182, %190 : vector<1x1x1xf32>
    %cst_75 = arith.constant 1.000000e+00 : f32
    %192 = arith.mulf %cst_75, %5 : f32
    %cst_76 = arith.constant 0.000000e+00 : f32
    %193 = arith.mulf %cst_76, %6 : f32
    %194 = arith.addf %192, %193 : f32
    %cst_77 = arith.constant 0.000000e+00 : f32
    %195 = arith.mulf %cst_77, %7 : f32
    %196 = arith.addf %194, %195 : f32
    %cst_78 = arith.constant -5.000000e-01 : f32
    %197 = arith.mulf %cst_78, %196 : f32
    %198 = vector.broadcast %197 : f32 to vector<1x1x1xf32>
    %199 = math.exp %198 : vector<1x1x1xf32>
    %200 = arith.addf %191, %199 : vector<1x1x1xf32>
    %cst_79 = arith.constant 1.000000e+00 : f32
    %201 = arith.mulf %cst_79, %5 : f32
    %cst_80 = arith.constant 2.000000e+00 : f32
    %202 = arith.mulf %cst_80, %6 : f32
    %203 = arith.addf %201, %202 : f32
    %cst_81 = arith.constant 1.000000e+00 : f32
    %204 = arith.mulf %cst_81, %7 : f32
    %205 = arith.addf %203, %204 : f32
    %cst_82 = arith.constant -5.000000e-01 : f32
    %206 = arith.mulf %cst_82, %205 : f32
    %207 = vector.broadcast %206 : f32 to vector<1x1x1xf32>
    %208 = math.exp %207 : vector<1x1x1xf32>
    %209 = arith.addf %200, %208 : vector<1x1x1xf32>
    %cst_83 = arith.constant 1.000000e+00 : f32
    %210 = arith.mulf %cst_83, %5 : f32
    %cst_84 = arith.constant 4.000000e+00 : f32
    %211 = arith.mulf %cst_84, %6 : f32
    %212 = arith.addf %210, %211 : f32
    %cst_85 = arith.constant 4.000000e+00 : f32
    %213 = arith.mulf %cst_85, %7 : f32
    %214 = arith.addf %212, %213 : f32
    %cst_86 = arith.constant -5.000000e-01 : f32
    %215 = arith.mulf %cst_86, %214 : f32
    %216 = vector.broadcast %215 : f32 to vector<1x1x1xf32>
    %217 = math.exp %216 : vector<1x1x1xf32>
    %218 = arith.addf %209, %217 : vector<1x1x1xf32>
    %cst_87 = arith.constant 4.000000e+00 : f32
    %219 = arith.mulf %cst_87, %5 : f32
    %cst_88 = arith.constant -8.000000e+00 : f32
    %220 = arith.mulf %cst_88, %6 : f32
    %221 = arith.addf %219, %220 : f32
    %cst_89 = arith.constant 4.000000e+00 : f32
    %222 = arith.mulf %cst_89, %7 : f32
    %223 = arith.addf %221, %222 : f32
    %cst_90 = arith.constant -5.000000e-01 : f32
    %224 = arith.mulf %cst_90, %223 : f32
    %225 = vector.broadcast %224 : f32 to vector<1x1x1xf32>
    %226 = math.exp %225 : vector<1x1x1xf32>
    %227 = arith.addf %218, %226 : vector<1x1x1xf32>
    %cst_91 = arith.constant 4.000000e+00 : f32
    %228 = arith.mulf %cst_91, %5 : f32
    %cst_92 = arith.constant -4.000000e+00 : f32
    %229 = arith.mulf %cst_92, %6 : f32
    %230 = arith.addf %228, %229 : f32
    %cst_93 = arith.constant 1.000000e+00 : f32
    %231 = arith.mulf %cst_93, %7 : f32
    %232 = arith.addf %230, %231 : f32
    %cst_94 = arith.constant -5.000000e-01 : f32
    %233 = arith.mulf %cst_94, %232 : f32
    %234 = vector.broadcast %233 : f32 to vector<1x1x1xf32>
    %235 = math.exp %234 : vector<1x1x1xf32>
    %236 = arith.addf %227, %235 : vector<1x1x1xf32>
    %cst_95 = arith.constant 4.000000e+00 : f32
    %237 = arith.mulf %cst_95, %5 : f32
    %cst_96 = arith.constant 0.000000e+00 : f32
    %238 = arith.mulf %cst_96, %6 : f32
    %239 = arith.addf %237, %238 : f32
    %cst_97 = arith.constant 0.000000e+00 : f32
    %240 = arith.mulf %cst_97, %7 : f32
    %241 = arith.addf %239, %240 : f32
    %cst_98 = arith.constant -5.000000e-01 : f32
    %242 = arith.mulf %cst_98, %241 : f32
    %243 = vector.broadcast %242 : f32 to vector<1x1x1xf32>
    %244 = math.exp %243 : vector<1x1x1xf32>
    %245 = arith.addf %236, %244 : vector<1x1x1xf32>
    %cst_99 = arith.constant 4.000000e+00 : f32
    %246 = arith.mulf %cst_99, %5 : f32
    %cst_100 = arith.constant 4.000000e+00 : f32
    %247 = arith.mulf %cst_100, %6 : f32
    %248 = arith.addf %246, %247 : f32
    %cst_101 = arith.constant 1.000000e+00 : f32
    %249 = arith.mulf %cst_101, %7 : f32
    %250 = arith.addf %248, %249 : f32
    %cst_102 = arith.constant -5.000000e-01 : f32
    %251 = arith.mulf %cst_102, %250 : f32
    %252 = vector.broadcast %251 : f32 to vector<1x1x1xf32>
    %253 = math.exp %252 : vector<1x1x1xf32>
    %254 = arith.addf %245, %253 : vector<1x1x1xf32>
    %cst_103 = arith.constant 4.000000e+00 : f32
    %255 = arith.mulf %cst_103, %5 : f32
    %cst_104 = arith.constant 8.000000e+00 : f32
    %256 = arith.mulf %cst_104, %6 : f32
    %257 = arith.addf %255, %256 : f32
    %cst_105 = arith.constant 4.000000e+00 : f32
    %258 = arith.mulf %cst_105, %7 : f32
    %259 = arith.addf %257, %258 : f32
    %cst_106 = arith.constant -5.000000e-01 : f32
    %260 = arith.mulf %cst_106, %259 : f32
    %261 = vector.broadcast %260 : f32 to vector<1x1x1xf32>
    %262 = math.exp %261 : vector<1x1x1xf32>
    %263 = arith.addf %254, %262 : vector<1x1x1xf32>
    %cst_107 = arith.constant 1.000000e+00 : f32
    %264 = vector.broadcast %cst_107 : f32 to vector<1x1x1xf32>
    %265 = arith.divf %264, %263 : vector<1x1x1xf32>
    %c0_108 = arith.constant 0 : index
    %c0_109 = arith.constant 0 : index
    %c0_110 = arith.constant 0 : index
    %266 = tpu.strided_load %arg2[%c0_108, %c0_109, %c0_110] {strides = array<i32: 2, 2, 1>} : memref<16x16x8xf32, #tpu.memory_space<vmem>>, vector<6x6x8xf32>
    %267 = vector.broadcast %47 : vector<1x1x1xf32> to vector<6x6x8xf32>
    %268 = arith.mulf %266, %267 : vector<6x6x8xf32>
    %c0_111 = arith.constant 0 : index
    %c1 = arith.constant 1 : index
    %c0_112 = arith.constant 0 : index
    %269 = tpu.strided_load %arg2[%c0_111, %c1, %c0_112] {strides = array<i32: 2, 2, 1>} : memref<16x16x8xf32, #tpu.memory_space<vmem>>, vector<6x6x8xf32>
    %270 = vector.broadcast %55 : vector<1x1x1xf32> to vector<6x6x8xf32>
    %271 = arith.mulf %269, %270 : vector<6x6x8xf32>
    %272 = arith.addf %268, %271 : vector<6x6x8xf32>
    %c0_113 = arith.constant 0 : index
    %c2_114 = arith.constant 2 : index
    %c0_115 = arith.constant 0 : index
    %273 = tpu.strided_load %arg2[%c0_113, %c2_114, %c0_115] {strides = array<i32: 2, 2, 1>} : memref<16x16x8xf32, #tpu.memory_space<vmem>>, vector<6x6x8xf32>
    %274 = vector.broadcast %64 : vector<1x1x1xf32> to vector<6x6x8xf32>
    %275 = arith.mulf %273, %274 : vector<6x6x8xf32>
    %276 = arith.addf %272, %275 : vector<6x6x8xf32>
    %c0_116 = arith.constant 0 : index
    %c3_117 = arith.constant 3 : index
    %c0_118 = arith.constant 0 : index
    %277 = tpu.strided_load %arg2[%c0_116, %c3_117, %c0_118] {strides = array<i32: 2, 2, 1>} : memref<16x16x8xf32, #tpu.memory_space<vmem>>, vector<6x6x8xf32>
    %278 = vector.broadcast %73 : vector<1x1x1xf32> to vector<6x6x8xf32>
    %279 = arith.mulf %277, %278 : vector<6x6x8xf32>
    %280 = arith.addf %276, %279 : vector<6x6x8xf32>
    %c0_119 = arith.constant 0 : index
    %c4 = arith.constant 4 : index
    %c0_120 = arith.constant 0 : index
    %281 = tpu.strided_load %arg2[%c0_119, %c4, %c0_120] {strides = array<i32: 2, 2, 1>} : memref<16x16x8xf32, #tpu.memory_space<vmem>>, vector<6x6x8xf32>
    %282 = vector.broadcast %82 : vector<1x1x1xf32> to vector<6x6x8xf32>
    %283 = arith.mulf %281, %282 : vector<6x6x8xf32>
    %284 = arith.addf %280, %283 : vector<6x6x8xf32>
    %c1_121 = arith.constant 1 : index
    %c0_122 = arith.constant 0 : index
    %c0_123 = arith.constant 0 : index
    %285 = tpu.strided_load %arg2[%c1_121, %c0_122, %c0_123] {strides = array<i32: 2, 2, 1>} : memref<16x16x8xf32, #tpu.memory_space<vmem>>, vector<6x6x8xf32>
    %286 = vector.broadcast %91 : vector<1x1x1xf32> to vector<6x6x8xf32>
    %287 = arith.mulf %285, %286 : vector<6x6x8xf32>
    %288 = arith.addf %284, %287 : vector<6x6x8xf32>
    %c1_124 = arith.constant 1 : index
    %c1_125 = arith.constant 1 : index
    %c0_126 = arith.constant 0 : index
    %289 = tpu.strided_load %arg2[%c1_124, %c1_125, %c0_126] {strides = array<i32: 2, 2, 1>} : memref<16x16x8xf32, #tpu.memory_space<vmem>>, vector<6x6x8xf32>
    %290 = vector.broadcast %100 : vector<1x1x1xf32> to vector<6x6x8xf32>
    %291 = arith.mulf %289, %290 : vector<6x6x8xf32>
    %292 = arith.addf %288, %291 : vector<6x6x8xf32>
    %c1_127 = arith.constant 1 : index
    %c2_128 = arith.constant 2 : index
    %c0_129 = arith.constant 0 : index
    %293 = tpu.strided_load %arg2[%c1_127, %c2_128, %c0_129] {strides = array<i32: 2, 2, 1>} : memref<16x16x8xf32, #tpu.memory_space<vmem>>, vector<6x6x8xf32>
    %294 = vector.broadcast %109 : vector<1x1x1xf32> to vector<6x6x8xf32>
    %295 = arith.mulf %293, %294 : vector<6x6x8xf32>
    %296 = arith.addf %292, %295 : vector<6x6x8xf32>
    %c1_130 = arith.constant 1 : index
    %c3_131 = arith.constant 3 : index
    %c0_132 = arith.constant 0 : index
    %297 = tpu.strided_load %arg2[%c1_130, %c3_131, %c0_132] {strides = array<i32: 2, 2, 1>} : memref<16x16x8xf32, #tpu.memory_space<vmem>>, vector<6x6x8xf32>
    %298 = vector.broadcast %118 : vector<1x1x1xf32> to vector<6x6x8xf32>
    %299 = arith.mulf %297, %298 : vector<6x6x8xf32>
    %300 = arith.addf %296, %299 : vector<6x6x8xf32>
    %c1_133 = arith.constant 1 : index
    %c4_134 = arith.constant 4 : index
    %c0_135 = arith.constant 0 : index
    %301 = tpu.strided_load %arg2[%c1_133, %c4_134, %c0_135] {strides = array<i32: 2, 2, 1>} : memref<16x16x8xf32, #tpu.memory_space<vmem>>, vector<6x6x8xf32>
    %302 = vector.broadcast %127 : vector<1x1x1xf32> to vector<6x6x8xf32>
    %303 = arith.mulf %301, %302 : vector<6x6x8xf32>
    %304 = arith.addf %300, %303 : vector<6x6x8xf32>
    %c2_136 = arith.constant 2 : index
    %c0_137 = arith.constant 0 : index
    %c0_138 = arith.constant 0 : index
    %305 = tpu.strided_load %arg2[%c2_136, %c0_137, %c0_138] {strides = array<i32: 2, 2, 1>} : memref<16x16x8xf32, #tpu.memory_space<vmem>>, vector<6x6x8xf32>
    %306 = vector.broadcast %136 : vector<1x1x1xf32> to vector<6x6x8xf32>
    %307 = arith.mulf %305, %306 : vector<6x6x8xf32>
    %308 = arith.addf %304, %307 : vector<6x6x8xf32>
    %c2_139 = arith.constant 2 : index
    %c1_140 = arith.constant 1 : index
    %c0_141 = arith.constant 0 : index
    %309 = tpu.strided_load %arg2[%c2_139, %c1_140, %c0_141] {strides = array<i32: 2, 2, 1>} : memref<16x16x8xf32, #tpu.memory_space<vmem>>, vector<6x6x8xf32>
    %310 = vector.broadcast %145 : vector<1x1x1xf32> to vector<6x6x8xf32>
    %311 = arith.mulf %309, %310 : vector<6x6x8xf32>
    %312 = arith.addf %308, %311 : vector<6x6x8xf32>
    %c2_142 = arith.constant 2 : index
    %c2_143 = arith.constant 2 : index
    %c0_144 = arith.constant 0 : index
    %313 = tpu.strided_load %arg2[%c2_142, %c2_143, %c0_144] {strides = array<i32: 2, 2, 1>} : memref<16x16x8xf32, #tpu.memory_space<vmem>>, vector<6x6x8xf32>
    %314 = vector.broadcast %154 : vector<1x1x1xf32> to vector<6x6x8xf32>
    %315 = arith.mulf %313, %314 : vector<6x6x8xf32>
    %316 = arith.addf %312, %315 : vector<6x6x8xf32>
    %c2_145 = arith.constant 2 : index
    %c3_146 = arith.constant 3 : index
    %c0_147 = arith.constant 0 : index
    %317 = tpu.strided_load %arg2[%c2_145, %c3_146, %c0_147] {strides = array<i32: 2, 2, 1>} : memref<16x16x8xf32, #tpu.memory_space<vmem>>, vector<6x6x8xf32>
    %318 = vector.broadcast %163 : vector<1x1x1xf32> to vector<6x6x8xf32>
    %319 = arith.mulf %317, %318 : vector<6x6x8xf32>
    %320 = arith.addf %316, %319 : vector<6x6x8xf32>
    %c2_148 = arith.constant 2 : index
    %c4_149 = arith.constant 4 : index
    %c0_150 = arith.constant 0 : index
    %321 = tpu.strided_load %arg2[%c2_148, %c4_149, %c0_150] {strides = array<i32: 2, 2, 1>} : memref<16x16x8xf32, #tpu.memory_space<vmem>>, vector<6x6x8xf32>
    %322 = vector.broadcast %172 : vector<1x1x1xf32> to vector<6x6x8xf32>
    %323 = arith.mulf %321, %322 : vector<6x6x8xf32>
    %324 = arith.addf %320, %323 : vector<6x6x8xf32>
    %c3_151 = arith.constant 3 : index
    %c0_152 = arith.constant 0 : index
    %c0_153 = arith.constant 0 : index
    %325 = tpu.strided_load %arg2[%c3_151, %c0_152, %c0_153] {strides = array<i32: 2, 2, 1>} : memref<16x16x8xf32, #tpu.memory_space<vmem>>, vector<6x6x8xf32>
    %326 = vector.broadcast %181 : vector<1x1x1xf32> to vector<6x6x8xf32>
    %327 = arith.mulf %325, %326 : vector<6x6x8xf32>
    %328 = arith.addf %324, %327 : vector<6x6x8xf32>
    %c3_154 = arith.constant 3 : index
    %c1_155 = arith.constant 1 : index
    %c0_156 = arith.constant 0 : index
    %329 = tpu.strided_load %arg2[%c3_154, %c1_155, %c0_156] {strides = array<i32: 2, 2, 1>} : memref<16x16x8xf32, #tpu.memory_space<vmem>>, vector<6x6x8xf32>
    %330 = vector.broadcast %190 : vector<1x1x1xf32> to vector<6x6x8xf32>
    %331 = arith.mulf %329, %330 : vector<6x6x8xf32>
    %332 = arith.addf %328, %331 : vector<6x6x8xf32>
    %c3_157 = arith.constant 3 : index
    %c2_158 = arith.constant 2 : index
    %c0_159 = arith.constant 0 : index
    %333 = tpu.strided_load %arg2[%c3_157, %c2_158, %c0_159] {strides = array<i32: 2, 2, 1>} : memref<16x16x8xf32, #tpu.memory_space<vmem>>, vector<6x6x8xf32>
    %334 = vector.broadcast %199 : vector<1x1x1xf32> to vector<6x6x8xf32>
    %335 = arith.mulf %333, %334 : vector<6x6x8xf32>
    %336 = arith.addf %332, %335 : vector<6x6x8xf32>
    %c3_160 = arith.constant 3 : index
    %c3_161 = arith.constant 3 : index
    %c0_162 = arith.constant 0 : index
    %337 = tpu.strided_load %arg2[%c3_160, %c3_161, %c0_162] {strides = array<i32: 2, 2, 1>} : memref<16x16x8xf32, #tpu.memory_space<vmem>>, vector<6x6x8xf32>
    %338 = vector.broadcast %208 : vector<1x1x1xf32> to vector<6x6x8xf32>
    %339 = arith.mulf %337, %338 : vector<6x6x8xf32>
    %340 = arith.addf %336, %339 : vector<6x6x8xf32>
    %c3_163 = arith.constant 3 : index
    %c4_164 = arith.constant 4 : index
    %c0_165 = arith.constant 0 : index
    %341 = tpu.strided_load %arg2[%c3_163, %c4_164, %c0_165] {strides = array<i32: 2, 2, 1>} : memref<16x16x8xf32, #tpu.memory_space<vmem>>, vector<6x6x8xf32>
    %342 = vector.broadcast %217 : vector<1x1x1xf32> to vector<6x6x8xf32>
    %343 = arith.mulf %341, %342 : vector<6x6x8xf32>
    %344 = arith.addf %340, %343 : vector<6x6x8xf32>
    %c4_166 = arith.constant 4 : index
    %c0_167 = arith.constant 0 : index
    %c0_168 = arith.constant 0 : index
    %345 = tpu.strided_load %arg2[%c4_166, %c0_167, %c0_168] {strides = array<i32: 2, 2, 1>} : memref<16x16x8xf32, #tpu.memory_space<vmem>>, vector<6x6x8xf32>
    %346 = vector.broadcast %226 : vector<1x1x1xf32> to vector<6x6x8xf32>
    %347 = arith.mulf %345, %346 : vector<6x6x8xf32>
    %348 = arith.addf %344, %347 : vector<6x6x8xf32>
    %c4_169 = arith.constant 4 : index
    %c1_170 = arith.constant 1 : index
    %c0_171 = arith.constant 0 : index
    %349 = tpu.strided_load %arg2[%c4_169, %c1_170, %c0_171] {strides = array<i32: 2, 2, 1>} : memref<16x16x8xf32, #tpu.memory_space<vmem>>, vector<6x6x8xf32>
    %350 = vector.broadcast %235 : vector<1x1x1xf32> to vector<6x6x8xf32>
    %351 = arith.mulf %349, %350 : vector<6x6x8xf32>
    %352 = arith.addf %348, %351 : vector<6x6x8xf32>
    %c4_172 = arith.constant 4 : index
    %c2_173 = arith.constant 2 : index
    %c0_174 = arith.constant 0 : index
    %353 = tpu.strided_load %arg2[%c4_172, %c2_173, %c0_174] {strides = array<i32: 2, 2, 1>} : memref<16x16x8xf32, #tpu.memory_space<vmem>>, vector<6x6x8xf32>
    %354 = vector.broadcast %244 : vector<1x1x1xf32> to vector<6x6x8xf32>
    %355 = arith.mulf %353, %354 : vector<6x6x8xf32>
    %356 = arith.addf %352, %355 : vector<6x6x8xf32>
    %c4_175 = arith.constant 4 : index
    %c3_176 = arith.constant 3 : index
    %c0_177 = arith.constant 0 : index
    %357 = tpu.strided_load %arg2[%c4_175, %c3_176, %c0_177] {strides = array<i32: 2, 2, 1>} : memref<16x16x8xf32, #tpu.memory_space<vmem>>, vector<6x6x8xf32>
    %358 = vector.broadcast %253 : vector<1x1x1xf32> to vector<6x6x8xf32>
    %359 = arith.mulf %357, %358 : vector<6x6x8xf32>
    %360 = arith.addf %356, %359 : vector<6x6x8xf32>
    %c4_178 = arith.constant 4 : index
    %c4_179 = arith.constant 4 : index
    %c0_180 = arith.constant 0 : index
    %361 = tpu.strided_load %arg2[%c4_178, %c4_179, %c0_180] {strides = array<i32: 2, 2, 1>} : memref<16x16x8xf32, #tpu.memory_space<vmem>>, vector<6x6x8xf32>
    %362 = vector.broadcast %262 : vector<1x1x1xf32> to vector<6x6x8xf32>
    %363 = arith.mulf %361, %362 : vector<6x6x8xf32>
    %364 = arith.addf %360, %363 : vector<6x6x8xf32>
    %365 = vector.broadcast %265 : vector<1x1x1xf32> to vector<6x6x8xf32>
    %366 = arith.mulf %364, %365 : vector<6x6x8xf32>
    %c0_181 = arith.constant 0 : index
    %c0_182 = arith.constant 0 : index
    %c0_183 = arith.constant 0 : index
    %367 = vector.load %arg3[%c0_181, %c0_182, %c0_183] : memref<6x6x8xf32, #tpu.memory_space<vmem>>, vector<6x6x8xf32>
    tpu.vector_store %arg3[%c0_181, %c0_182, %c0_183], %366 {strides = array<i32>} : memref<6x6x8xf32, #tpu.memory_space<vmem>>, vector<6x6x8xf32>,
    return
  }
  func.func @transform_0(%arg0: i32) -> i32 {
    %c0_i32 = arith.constant 0 : i32
    %c0_i32_0 = arith.constant 0 : i32
    return %c0_i32 : i32
  }
  func.func @transform_1(%arg0: i32) -> (i32, i32, i32) {
    %c0_i32 = arith.constant 0 : i32
    %c0_i32_0 = arith.constant 0 : i32
    %c0_i32_1 = arith.constant 0 : i32
    return %c0_i32, %c0_i32_0, %arg0 : i32, i32, i32
  }
  func.func @transform_2(%arg0: i32) -> (i32, i32, i32) {
    %c0_i32 = arith.constant 0 : i32
    %c0_i32_0 = arith.constant 0 : i32
    %c0_i32_1 = arith.constant 0 : i32
    return %c0_i32, %c0_i32_0, %arg0 : i32, i32, i32
  }
  func.func @transform_3(%arg0: i32) -> (i32, i32, i32) {
    %c0_i32 = arith.constant 0 : i32
    %c0_i32_0 = arith.constant 0 : i32
    %c0_i32_1 = arith.constant 0 : i32
    return %arg0, %c0_i32, %c0_i32_0 : i32, i32, i32
  }
}

</mosaic_0001>

<llo_original>
// kernel: gaussian_kernel_forward.1
$region0: #{gaussian_kernel_forward.1}
  #allocation0 [shape = 'u32[]', space=smem, size = 0x4, offset = 0x4, fixed_abs, tag = 'smem constant byte address 0x4 - core index']
  #allocation1 [shape = 'u32[72,128]{1,0:T(1,128)}', space=vmem, size = 0x9000, scoped, tag = 'internal scratch']
  %s0 = inlined_call_operand.vmem [shape: f32[4], index: 0, kind: input, shape index: {}]
  %s1 = inlined_call_operand.vmem [shape: f32[16,16,8], index: 1, kind: input, shape index: {}]
  %s2 = inlined_call_operand.vmem [shape: f32[6,6,8], index: 2, kind: output, shape index: {0}]
  %s3 = inlined_call_operand.hbm [shape: f32[1,5,5], index: 3, kind: output, shape index: {1}]
  %4 = xla_tuple %s2, %s3
  %s5 = sld [smem:[#allocation0]]
  $region30: #{gaussian_kernel_forward.1} parent=0
    _
  %s7 = ssub.s32 1, %s5
  %s8 = scalar_select 0, %s7, %s5
  $region1: #{gaussian_kernel_forward.1} parent=0
    #allocation2 [shape = 'u8[512]{0}', space=smem, size = 0x200, scoped, tag = 'input window, operand 0, single buffered']
    #allocation3 [shape = 's32[1]{0}', space=sflag, size = 0x4, scoped, tag = 'scoped memory for gaussian_kernel_forward.1']
    #allocation4 [shape = 's32[1]{0}', space=sflag, size = 0x4, scoped, tag = 'scoped memory for gaussian_kernel_forward.1']
    #allocation5 [shape = 'u8[4096]{0}', space=vmem, size = 0x1000, scoped, tag = 'output window, operand 1, single buffered']
    %9 = vsyncpa [#allocation4], 0
    %10 = vsyncpa [#allocation3], 0
    // Predicated region
    $region2: #{gaussian_kernel_forward.1} parent=1 // pred_check
      _
    $region3: #{gaussian_kernel_forward.1} parent=1 // pred_check_branch
      %12 = sbr.rel (0) target = $region5
    $region4: #{gaussian_kernel_forward.1} parent=1 // pred_region
      %14 = vsyncadd [#allocation4], 0
      %s16 = sshll.u32 %s0, 4
      %s17 = int_to_ptr.vmem [resolvable:$true] %s16
      %19 = dma.vmem_to_smem %s17, 16, [#allocation2], [#allocation4]
    $region5: #{gaussian_kernel_forward.1} parent=1 // pred_fallthru
      _
    // Predicated region
    $region6: #{gaussian_kernel_forward.1} parent=1 // pred_check
      _
    $region7: #{gaussian_kernel_forward.1} parent=1 // pred_check_branch
      %21 = sbr.rel (0) target = $region9
    $region8: #{gaussian_kernel_forward.1} parent=1 // pred_region
      _
    $region9: #{gaussian_kernel_forward.1} parent=1 // pred_fallthru
      _
    // Predicated region
    $region10: #{gaussian_kernel_forward.1} parent=1 // pred_check
      _
    $region11: #{gaussian_kernel_forward.1} parent=1 // pred_check_branch
      %23 = sbr.rel (0) target = $region13
    $region12: #{gaussian_kernel_forward.1} parent=1 // pred_region
      %25 = dma.done [#allocation4], 16
    $region13: #{gaussian_kernel_forward.1} parent=1 // pred_fallthru
      _
    %26 = sfence
    %s27 = sld [smem:[#allocation2]]
    %s28 = sld [smem:[#allocation2 + $0x2]]
    %s29 = sld [smem:[#allocation2 + $0x3]]
    %s30 = smul.f32 %s27, %s27
    %s31 = smul.f32 %s28, %s28
    %s32 = sadd.f32 %s30, %s31
    %s33 = smul.f32 %s28, %s29
    %s34 = smul.f32 %s29, %s29
    %v35 = vlaneseq
    %v36 = vshrl.u32 %v35, 7
    %v37 = vcvt.s32.f32 %v36
    %v38 = vsub.f32 %v37, 2.0
    %v39 = vlaneseq
    %v40 = vand.u32 %v39, 127
    %v41 = vcvt.s32.f32 %v40
    %v42 = vsub.f32 %v41, 2.0
    %v43 = vstv %s32
    %v44 = vmul.f32 %v43, %v38
    %v45 = vmul.f32 %v44, %v38
    %s46 = smul.f32 %s33, 2.0
    %v47 = vstv %s46
    %v48 = vmul.f32 %v47, %v38
    %v49 = vmul.f32 %v48, %v42
    %v50 = vadd.f32 %v45, %v49
    %v51 = vstv %s34
    %v52 = vmul.f32 %v51, %v42
    %v53 = vmul.f32 %v52, %v42
    %v54 = vadd.f32 %v50, %v53
    %v55 = vmul.f32 %v54, -0.5
    %v56 = vmul.f32 %v55, 1.442695
    %v57 = vpow.pop %v56
    %vm58 = vcmask 36864
    %v59 = vsel %vm58, %v57, 0.0
    %60 = vadd.xlane.f32.xlu0 %v59
    %v61 = vpop.xlane.xlu0 %60
    %v62 = vrot.slane %v61, 4
    %v63 = vadd.f32 %v61, %v62
    %v64 = vrot.slane %v63, 2
    %v65 = vadd.f32 %v63, %v64
    %v66 = vrot.slane %v65, 1
    %v67 = vadd.f32 %v65, %v66
    %s68 = vtos %v67
    %v69 = vstv %s68
    %v70 = vrcp.pop %v69
    %v71 = vmul.f32 %v69, %v70
    %v72 = vsub.f32 1.0, %v71
    %v73 = vmul.f32 %v70, %v72
    %v74 = vadd.f32 %v70, %v73
    %vm75 = vweird.f32 %v69
    %vm76 = vweird.f32 %v70
    %vm77 = vmor %vm75, %vm76
    %v78 = vsel %vm77, %v70, %v74
    %v79 = vand.u32 2147483647, %v69
    %vm80 = vcmp.eq.f32.partialorder %v79, 8.507059e+37
    %v81 = vand.u32 %v69, 2147483648
    %v82 = vor.u32 1.1754944e-38, %v81
    %v83 = vsel %vm80, %v82, %v78
    %v84 = vmul.f32 %v57, %v83
    %85 = vst.msk [vmem:[#allocation5] sm:$0x1f] %vm58, %v84
    %s86 = smul.f32 %s32, 4.0
    %s87 = smul.f32 %s33, 8.0
    %s88 = sadd.f32 %s86, %s87
    %s89 = smul.f32 %s34, 4.0
    %s90 = sadd.f32 %s88, %s89
    %s91 = smul.f32 %s90, -0.5
    %v92 = vstv %s91
    %v93 = vmul.f32 %v92, 1.442695
    %v94 = vpow.pop %v93
    %s95 = smul.f32 %s33, 4.0
    %s96 = sadd.f32 %s86, %s95
    %s97 = sadd.f32 %s96, %s34
    %s98 = smul.f32 %s97, -0.5
    %v99 = vstv %s98
    %v100 = vmul.f32 %v99, 1.442695
    %v101 = vpow.pop %v100
    %v102 = vadd.f32 %v94, %v101
    %s103 = smul.f32 %s33, -0.0
    %s104 = sadd.f32 %s86, %s103
    %s105 = smul.f32 %s34, 0.0
    %s106 = sadd.f32 %s104, %s105
    %s107 = smul.f32 %s106, -0.5
    %v108 = vstv %s107
    %v109 = vmul.f32 %v108, 1.442695
    %v110 = vpow.pop %v109
    %v111 = vadd.f32 %v102, %v110
    %s112 = smul.f32 %s33, -4.0
    %s113 = sadd.f32 %s86, %s112
    %s114 = sadd.f32 %s113, %s34
    %s115 = smul.f32 %s114, -0.5
    %v116 = vstv %s115
    %v117 = vmul.f32 %v116, 1.442695
    %v118 = vpow.pop %v117
    %v119 = vadd.f32 %v111, %v118
    %s120 = smul.f32 %s33, -8.0
    %s121 = sadd.f32 %s86, %s120
    %s122 = sadd.f32 %s121, %s89
    %s123 = smul.f32 %s122, -0.5
    %v124 = vstv %s123
    %v125 = vmul.f32 %v124, 1.442695
    %v126 = vpow.pop %v125
    %v127 = vadd.f32 %v119, %v126
    %s128 = sadd.f32 %s32, %s95
    %s129 = sadd.f32 %s128, %s89
    %s130 = smul.f32 %s129, -0.5
    %v131 = vstv %s130
    %v132 = vmul.f32 %v131, 1.442695
    %v133 = vpow.pop %v132
    %v134 = vadd.f32 %v127, %v133
    %s135 = sadd.f32 %s32, %s46
    %s136 = sadd.f32 %s135, %s34
    %s137 = smul.f32 %s136, -0.5
    %v138 = vstv %s137
    %v139 = vmul.f32 %v138, 1.442695
    %v140 = vpow.pop %v139
    %v141 = vadd.f32 %v134, %v140
    %s142 = sadd.f32 %s32, %s103
    %s143 = sadd.f32 %s142, %s105
    %s144 = smul.f32 %s143, -0.5
    %v145 = vstv %s144
    %v146 = vmul.f32 %v145, 1.442695
    %v147 = vpow.pop %v146
    %v148 = vadd.f32 %v141, %v147
    %s149 = smul.f32 %s33, -2.0
    %s150 = sadd.f32 %s32, %s149
    %s151 = sadd.f32 %s150, %s34
    %s152 = smul.f32 %s151, -0.5
    %v153 = vstv %s152
    %v154 = vmul.f32 %v153, 1.442695
    %v155 = vpow.pop %v154
    %v156 = vadd.f32 %v148, %v155
    %s157 = sadd.f32 %s32, %s112
    %s158 = sadd.f32 %s157, %s89
    %s159 = smul.f32 %s158, -0.5
    %v160 = vstv %s159
    %v161 = vmul.f32 %v160, 1.442695
    %v162 = vpow.pop %v161
    %v163 = vadd.f32 %v156, %v162
    %s164 = smul.f32 %s32, 0.0
    %s165 = sadd.f32 %s164, %s103
    %s166 = sadd.f32 %s165, %s89
    %s167 = smul.f32 %s166, -0.5
    %v168 = vstv %s167
    %v169 = vmul.f32 %v168, 1.442695
    %v170 = vpow.pop %v169
    %v171 = vadd.f32 %v163, %v170
    %s172 = sadd.f32 %s165, %s34
    %s173 = smul.f32 %s172, -0.5
    %v174 = vstv %s173
    %v175 = vmul.f32 %v174, 1.442695
    %v176 = vpow.pop %v175
    %v177 = vadd.f32 %v171, %v176
    %s178 = smul.f32 %s33, 0.0
    %s179 = sadd.f32 %s164, %s178
    %s180 = sadd.f32 %s179, %s105
    %s181 = smul.f32 %s180, -0.5
    %v182 = vstv %s181
    %v183 = vmul.f32 %v182, 1.442695
    %v184 = vpow.pop %v183
    %v185 = vadd.f32 %v177, %v184
    %s186 = sadd.f32 %s179, %s34
    %s187 = smul.f32 %s186, -0.5
    %v188 = vstv %s187
    %v189 = vmul.f32 %v188, 1.442695
    %v190 = vpow.pop %v189
    %v191 = vadd.f32 %v185, %v190
    %s192 = sadd.f32 %s179, %s89
    %s193 = smul.f32 %s192, -0.5
    %v194 = vstv %s193
    %v195 = vmul.f32 %v194, 1.442695
    %v196 = vpow.pop %v195
    %v197 = vadd.f32 %v191, %v196
    %v198 = vadd.f32 %v197, %v162
    %v199 = vadd.f32 %v198, %v155
    %s200 = sadd.f32 %s32, %s178
    %s201 = sadd.f32 %s200, %s105
    %s202 = smul.f32 %s201, -0.5
    %v203 = vstv %s202
    %v204 = vmul.f32 %v203, 1.442695
    %v205 = vpow.pop %v204
    %v206 = vadd.f32 %v199, %v205
    %v207 = vadd.f32 %v206, %v140
    %v208 = vadd.f32 %v207, %v133
    %v209 = vadd.f32 %v208, %v126
    %v210 = vadd.f32 %v209, %v118
    %s211 = sadd.f32 %s86, %s178
    %s212 = sadd.f32 %s211, %s105
    %s213 = smul.f32 %s212, -0.5
    %v214 = vstv %s213
    %v215 = vmul.f32 %v214, 1.442695
    %v216 = vpow.pop %v215
    %v217 = vadd.f32 %v210, %v216
    %v218 = vadd.f32 %v217, %v101
    %v219 = vadd.f32 %v218, %v94
    %v220 = vrcp.pop %v219
    %v221 = vmul.f32 %v219, %v220
    %v222 = vsub.f32 1.0, %v221
    %v223 = vmul.f32 %v220, %v222
    %v224 = vadd.f32 %v220, %v223
    %vm225 = vweird.f32 %v219
    %vm226 = vweird.f32 %v220
    %vm227 = vmor %vm225, %vm226
    %v228 = vsel %vm227, %v220, %v224
    %v229 = vand.u32 2147483647, %v219
    %vm230 = vcmp.eq.f32.partialorder %v229, 8.507059e+37
    %v231 = vand.u32 %v219, 2147483648
    %v232 = vor.u32 1.1754944e-38, %v231
    %v233 = vsel %vm230, %v232, %v228
    %v234 = vmul.f32 1.0, %v233
    %v235 = vld [vmem:[%s1] ss:$2 sm:$0x3f]
    %s236 = scalar_lea.vmem %s1, 32
    %v237 = vld [vmem:[%s236] ss:$2 sm:$0x3f]
    %s238 = scalar_lea.vmem %s1, 64
    %v239 = vld [vmem:[%s238] ss:$2 sm:$0x3f]
    %s240 = scalar_lea.vmem %s1, 96
    %v241 = vld [vmem:[%s240] ss:$2 sm:$0x3f]
    %s242 = scalar_lea.vmem %s1, 128
    %v243 = vld [vmem:[%s242] ss:$2 sm:$0x3f]
    %s244 = scalar_lea.vmem %s1, 160
    %v245 = vld [vmem:[%s244] ss:$2 sm:$0x3f]
    %v246 = vmul.f32 %v235, %v94
    %v247 = vmul.f32 %v237, %v94
    %v248 = vmul.f32 %v239, %v94
    %v249 = vmul.f32 %v241, %v94
    %v250 = vmul.f32 %v243, %v94
    %v251 = vmul.f32 %v245, %v94
    %s252 = scalar_lea.vmem %s1, 1
    %v253 = vld [vmem:[%s252] ss:$2 sm:$0x3f]
    %s254 = scalar_lea.vmem %s1, 33
    %v255 = vld [vmem:[%s254] ss:$2 sm:$0x3f]
    %s256 = scalar_lea.vmem %s1, 65
    %v257 = vld [vmem:[%s256] ss:$2 sm:$0x3f]
    %s258 = scalar_lea.vmem %s1, 97
    %v259 = vld [vmem:[%s258] ss:$2 sm:$0x3f]
    %s260 = scalar_lea.vmem %s1, 129
    %v261 = vld [vmem:[%s260] ss:$2 sm:$0x3f]
    %s262 = scalar_lea.vmem %s1, 161
    %v263 = vld [vmem:[%s262] ss:$2 sm:$0x3f]
    %v264 = vmul.f32 %v253, %v101
    %v265 = vmul.f32 %v255, %v101
    %v266 = vmul.f32 %v257, %v101
    %v267 = vmul.f32 %v259, %v101
    %v268 = vmul.f32 %v261, %v101
    %v269 = vmul.f32 %v263, %v101
    %v270 = vadd.f32 %v246, %v264
    %v271 = vadd.f32 %v247, %v265
    %v272 = vadd.f32 %v248, %v266
    %v273 = vadd.f32 %v249, %v267
    %v274 = vadd.f32 %v250, %v268
    %v275 = vadd.f32 %v251, %v269
    %s276 = scalar_lea.vmem %s1, 2
    %v277 = vld [vmem:[%s276] ss:$2 sm:$0x3f]
    %s278 = scalar_lea.vmem %s1, 34
    %v279 = vld [vmem:[%s278] ss:$2 sm:$0x3f]
    %s280 = scalar_lea.vmem %s1, 66
    %v281 = vld [vmem:[%s280] ss:$2 sm:$0x3f]
    %s282 = scalar_lea.vmem %s1, 98
    %v283 = vld [vmem:[%s282] ss:$2 sm:$0x3f]
    %s284 = scalar_lea.vmem %s1, 130
    %v285 = vld [vmem:[%s284] ss:$2 sm:$0x3f]
    %s286 = scalar_lea.vmem %s1, 162
    %v287 = vld [vmem:[%s286] ss:$2 sm:$0x3f]
    %v288 = vmul.f32 %v277, %v110
    %v289 = vmul.f32 %v279, %v110
    %v290 = vmul.f32 %v281, %v110
    %v291 = vmul.f32 %v283, %v110
    %v292 = vmul.f32 %v285, %v110
    %v293 = vmul.f32 %v287, %v110
    %v294 = vadd.f32 %v270, %v288
    %v295 = vadd.f32 %v271, %v289
    %v296 = vadd.f32 %v272, %v290
    %v297 = vadd.f32 %v273, %v291
    %v298 = vadd.f32 %v274, %v292
    %v299 = vadd.f32 %v275, %v293
    %s300 = scalar_lea.vmem %s1, 3
    %v301 = vld [vmem:[%s300] ss:$2 sm:$0x3f]
    %s302 = scalar_lea.vmem %s1, 35
    %v303 = vld [vmem:[%s302] ss:$2 sm:$0x3f]
    %s304 = scalar_lea.vmem %s1, 67
    %v305 = vld [vmem:[%s304] ss:$2 sm:$0x3f]
    %s306 = scalar_lea.vmem %s1, 99
    %v307 = vld [vmem:[%s306] ss:$2 sm:$0x3f]
    %s308 = scalar_lea.vmem %s1, 131
    %v309 = vld [vmem:[%s308] ss:$2 sm:$0x3f]
    %s310 = scalar_lea.vmem %s1, 163
    %v311 = vld [vmem:[%s310] ss:$2 sm:$0x3f]
    %v312 = vmul.f32 %v301, %v118
    %v313 = vmul.f32 %v303, %v118
    %v314 = vmul.f32 %v305, %v118
    %v315 = vmul.f32 %v307, %v118
    %v316 = vmul.f32 %v309, %v118
    %v317 = vmul.f32 %v311, %v118
    %v318 = vadd.f32 %v294, %v312
    %v319 = vadd.f32 %v295, %v313
    %v320 = vadd.f32 %v296, %v314
    %v321 = vadd.f32 %v297, %v315
    %v322 = vadd.f32 %v298, %v316
    %v323 = vadd.f32 %v299, %v317
    %s324 = scalar_lea.vmem %s1, 4
    %v325 = vld [vmem:[%s324] ss:$2 sm:$0x3f]
    %s326 = scalar_lea.vmem %s1, 36
    %v327 = vld [vmem:[%s326] ss:$2 sm:$0x3f]
    %s328 = scalar_lea.vmem %s1, 68
    %v329 = vld [vmem:[%s328] ss:$2 sm:$0x3f]
    %s330 = scalar_lea.vmem %s1, 100
    %v331 = vld [vmem:[%s330] ss:$2 sm:$0x3f]
    %s332 = scalar_lea.vmem %s1, 132
    %v333 = vld [vmem:[%s332] ss:$2 sm:$0x3f]
    %s334 = scalar_lea.vmem %s1, 164
    %v335 = vld [vmem:[%s334] ss:$2 sm:$0x3f]
    %v336 = vmul.f32 %v325, %v126
    %v337 = vmul.f32 %v327, %v126
    %v338 = vmul.f32 %v329, %v126
    %v339 = vmul.f32 %v331, %v126
    %v340 = vmul.f32 %v333, %v126
    %v341 = vmul.f32 %v335, %v126
    %v342 = vadd.f32 %v318, %v336
    %v343 = vadd.f32 %v319, %v337
    %v344 = vadd.f32 %v320, %v338
    %v345 = vadd.f32 %v321, %v339
    %v346 = vadd.f32 %v322, %v340
    %v347 = vadd.f32 %v323, %v341
    %s348 = scalar_lea.vmem %s1, 16
    %v349 = vld [vmem:[%s348] ss:$2 sm:$0x3f]
    %s350 = scalar_lea.vmem %s348, 32
    %v351 = vld [vmem:[%s350] ss:$2 sm:$0x3f]
    %s352 = scalar_lea.vmem %s348, 64
    %v353 = vld [vmem:[%s352] ss:$2 sm:$0x3f]
    %s354 = scalar_lea.vmem %s348, 96
    %v355 = vld [vmem:[%s354] ss:$2 sm:$0x3f]
    %s356 = scalar_lea.vmem %s348, 128
    %v357 = vld [vmem:[%s356] ss:$2 sm:$0x3f]
    %s358 = scalar_lea.vmem %s348, 160
    %v359 = vld [vmem:[%s358] ss:$2 sm:$0x3f]
    %v360 = vmul.f32 %v349, %v133
    %v361 = vmul.f32 %v351, %v133
    %v362 = vmul.f32 %v353, %v133
    %v363 = vmul.f32 %v355, %v133
    %v364 = vmul.f32 %v357, %v133
    %v365 = vmul.f32 %v359, %v133
    %v366 = vadd.f32 %v342, %v360
    %v367 = vadd.f32 %v343, %v361
    %v368 = vadd.f32 %v344, %v362
    %v369 = vadd.f32 %v345, %v363
    %v370 = vadd.f32 %v346, %v364
    %v371 = vadd.f32 %v347, %v365
    %s372 = scalar_lea.vmem %s348, 1
    %v373 = vld [vmem:[%s372] ss:$2 sm:$0x3f]
    %s374 = scalar_lea.vmem %s348, 33
    %v375 = vld [vmem:[%s374] ss:$2 sm:$0x3f]
    %s376 = scalar_lea.vmem %s348, 65
    %v377 = vld [vmem:[%s376] ss:$2 sm:$0x3f]
    %s378 = scalar_lea.vmem %s348, 97
    %v379 = vld [vmem:[%s378] ss:$2 sm:$0x3f]
    %s380 = scalar_lea.vmem %s348, 129
    %v381 = vld [vmem:[%s380] ss:$2 sm:$0x3f]
    %s382 = scalar_lea.vmem %s348, 161
    %v383 = vld [vmem:[%s382] ss:$2 sm:$0x3f]
    %v384 = vmul.f32 %v373, %v140
    %v385 = vmul.f32 %v375, %v140
    %v386 = vmul.f32 %v377, %v140
    %v387 = vmul.f32 %v379, %v140
    %v388 = vmul.f32 %v381, %v140
    %v389 = vmul.f32 %v383, %v140
    %v390 = vadd.f32 %v366, %v384
    %v391 = vadd.f32 %v367, %v385
    %v392 = vadd.f32 %v368, %v386
    %v393 = vadd.f32 %v369, %v387
    %v394 = vadd.f32 %v370, %v388
    %v395 = vadd.f32 %v371, %v389
    %s396 = scalar_lea.vmem %s348, 2
    %v397 = vld [vmem:[%s396] ss:$2 sm:$0x3f]
    %s398 = scalar_lea.vmem %s348, 34
    %v399 = vld [vmem:[%s398] ss:$2 sm:$0x3f]
    %s400 = scalar_lea.vmem %s348, 66
    %v401 = vld [vmem:[%s400] ss:$2 sm:$0x3f]
    %s402 = scalar_lea.vmem %s348, 98
    %v403 = vld [vmem:[%s402] ss:$2 sm:$0x3f]
    %s404 = scalar_lea.vmem %s348, 130
    %v405 = vld [vmem:[%s404] ss:$2 sm:$0x3f]
    %s406 = scalar_lea.vmem %s348, 162
    %v407 = vld [vmem:[%s406] ss:$2 sm:$0x3f]
    %v408 = vmul.f32 %v397, %v147
    %v409 = vmul.f32 %v399, %v147
    %v410 = vmul.f32 %v401, %v147
    %v411 = vmul.f32 %v403, %v147
    %v412 = vmul.f32 %v405, %v147
    %v413 = vmul.f32 %v407, %v147
    %v414 = vadd.f32 %v390, %v408
    %v415 = vadd.f32 %v391, %v409
    %v416 = vadd.f32 %v392, %v410
    %v417 = vadd.f32 %v393, %v411
    %v418 = vadd.f32 %v394, %v412
    %v419 = vadd.f32 %v395, %v413
    %s420 = scalar_lea.vmem %s348, 3
    %v421 = vld [vmem:[%s420] ss:$2 sm:$0x3f]
    %s422 = scalar_lea.vmem %s348, 35
    %v423 = vld [vmem:[%s422] ss:$2 sm:$0x3f]
    %s424 = scalar_lea.vmem %s348, 67
    %v425 = vld [vmem:[%s424] ss:$2 sm:$0x3f]
    %s426 = scalar_lea.vmem %s348, 99
    %v427 = vld [vmem:[%s426] ss:$2 sm:$0x3f]
    %s428 = scalar_lea.vmem %s348, 131
    %v429 = vld [vmem:[%s428] ss:$2 sm:$0x3f]
    %s430 = scalar_lea.vmem %s348, 163
    %v431 = vld [vmem:[%s430] ss:$2 sm:$0x3f]
    %v432 = vmul.f32 %v421, %v155
    %v433 = vmul.f32 %v423, %v155
    %v434 = vmul.f32 %v425, %v155
    %v435 = vmul.f32 %v427, %v155
    %v436 = vmul.f32 %v429, %v155
    %v437 = vmul.f32 %v431, %v155
    %v438 = vadd.f32 %v414, %v432
    %v439 = vadd.f32 %v415, %v433
    %v440 = vadd.f32 %v416, %v434
    %v441 = vadd.f32 %v417, %v435
    %v442 = vadd.f32 %v418, %v436
    %v443 = vadd.f32 %v419, %v437
    %s444 = scalar_lea.vmem %s348, 4
    %v445 = vld [vmem:[%s444] ss:$2 sm:$0x3f]
    %s446 = scalar_lea.vmem %s348, 36
    %v447 = vld [vmem:[%s446] ss:$2 sm:$0x3f]
    %s448 = scalar_lea.vmem %s348, 68
    %v449 = vld [vmem:[%s448] ss:$2 sm:$0x3f]
    %s450 = scalar_lea.vmem %s348, 100
    %v451 = vld [vmem:[%s450] ss:$2 sm:$0x3f]
    %s452 = scalar_lea.vmem %s348, 132
    %v453 = vld [vmem:[%s452] ss:$2 sm:$0x3f]
    %s454 = scalar_lea.vmem %s348, 164
    %v455 = vld [vmem:[%s454] ss:$2 sm:$0x3f]
    %v456 = vmul.f32 %v445, %v162
    %v457 = vmul.f32 %v447, %v162
    %v458 = vmul.f32 %v449, %v162
    %v459 = vmul.f32 %v451, %v162
    %v460 = vmul.f32 %v453, %v162
    %v461 = vmul.f32 %v455, %v162
    %v462 = vadd.f32 %v438, %v456
    %v463 = vadd.f32 %v439, %v457
    %v464 = vadd.f32 %v440, %v458
    %v465 = vadd.f32 %v441, %v459
    %v466 = vadd.f32 %v442, %v460
    %v467 = vadd.f32 %v443, %v461
    %s468 = scalar_lea.vmem %s1, 32
    %v469 = vld [vmem:[%s468] ss:$2 sm:$0x3f]
    %s470 = scalar_lea.vmem %s468, 32
    %v471 = vld [vmem:[%s470] ss:$2 sm:$0x3f]
    %s472 = scalar_lea.vmem %s468, 64
    %v473 = vld [vmem:[%s472] ss:$2 sm:$0x3f]
    %s474 = scalar_lea.vmem %s468, 96
    %v475 = vld [vmem:[%s474] ss:$2 sm:$0x3f]
    %s476 = scalar_lea.vmem %s468, 128
    %v477 = vld [vmem:[%s476] ss:$2 sm:$0x3f]
    %s478 = scalar_lea.vmem %s468, 160
    %v479 = vld [vmem:[%s478] ss:$2 sm:$0x3f]
    %v480 = vmul.f32 %v469, %v170
    %v481 = vmul.f32 %v471, %v170
    %v482 = vmul.f32 %v473, %v170
    %v483 = vmul.f32 %v475, %v170
    %v484 = vmul.f32 %v477, %v170
    %v485 = vmul.f32 %v479, %v170
    %v486 = vadd.f32 %v462, %v480
    %v487 = vadd.f32 %v463, %v481
    %v488 = vadd.f32 %v464, %v482
    %v489 = vadd.f32 %v465, %v483
    %v490 = vadd.f32 %v466, %v484
    %v491 = vadd.f32 %v467, %v485
    %s492 = scalar_lea.vmem %s468, 1
    %v493 = vld [vmem:[%s492] ss:$2 sm:$0x3f]
    %s494 = scalar_lea.vmem %s468, 33
    %v495 = vld [vmem:[%s494] ss:$2 sm:$0x3f]
    %s496 = scalar_lea.vmem %s468, 65
    %v497 = vld [vmem:[%s496] ss:$2 sm:$0x3f]
    %s498 = scalar_lea.vmem %s468, 97
    %v499 = vld [vmem:[%s498] ss:$2 sm:$0x3f]
    %s500 = scalar_lea.vmem %s468, 129
    %v501 = vld [vmem:[%s500] ss:$2 sm:$0x3f]
    %s502 = scalar_lea.vmem %s468, 161
    %v503 = vld [vmem:[%s502] ss:$2 sm:$0x3f]
    %v504 = vmul.f32 %v493, %v176
    %v505 = vmul.f32 %v495, %v176
    %v506 = vmul.f32 %v497, %v176
    %v507 = vmul.f32 %v499, %v176
    %v508 = vmul.f32 %v501, %v176
    %v509 = vmul.f32 %v503, %v176
    %v510 = vadd.f32 %v486, %v504
    %v511 = vadd.f32 %v487, %v505
    %v512 = vadd.f32 %v488, %v506
    %v513 = vadd.f32 %v489, %v507
    %v514 = vadd.f32 %v490, %v508
    %v515 = vadd.f32 %v491, %v509
    %s516 = scalar_lea.vmem %s468, 2
    %v517 = vld [vmem:[%s516] ss:$2 sm:$0x3f]
    %s518 = scalar_lea.vmem %s468, 34
    %v519 = vld [vmem:[%s518] ss:$2 sm:$0x3f]
    %s520 = scalar_lea.vmem %s468, 66
    %v521 = vld [vmem:[%s520] ss:$2 sm:$0x3f]
    %s522 = scalar_lea.vmem %s468, 98
    %v523 = vld [vmem:[%s522] ss:$2 sm:$0x3f]
    %s524 = scalar_lea.vmem %s468, 130
    %v525 = vld [vmem:[%s524] ss:$2 sm:$0x3f]
    %s526 = scalar_lea.vmem %s468, 162
    %v527 = vld [vmem:[%s526] ss:$2 sm:$0x3f]
    %v528 = vmul.f32 %v517, %v184
    %v529 = vmul.f32 %v519, %v184
    %v530 = vmul.f32 %v521, %v184
    %v531 = vmul.f32 %v523, %v184
    %v532 = vmul.f32 %v525, %v184
    %v533 = vmul.f32 %v527, %v184
    %v534 = vadd.f32 %v510, %v528
    %v535 = vadd.f32 %v511, %v529
    %v536 = vadd.f32 %v512, %v530
    %v537 = vadd.f32 %v513, %v531
    %v538 = vadd.f32 %v514, %v532
    %v539 = vadd.f32 %v515, %v533
    %s540 = scalar_lea.vmem %s468, 3
    %v541 = vld [vmem:[%s540] ss:$2 sm:$0x3f]
    %s542 = scalar_lea.vmem %s468, 35
    %v543 = vld [vmem:[%s542] ss:$2 sm:$0x3f]
    %s544 = scalar_lea.vmem %s468, 67
    %v545 = vld [vmem:[%s544] ss:$2 sm:$0x3f]
    %s546 = scalar_lea.vmem %s468, 99
    %v547 = vld [vmem:[%s546] ss:$2 sm:$0x3f]
    %s548 = scalar_lea.vmem %s468, 131
    %v549 = vld [vmem:[%s548] ss:$2 sm:$0x3f]
    %s550 = scalar_lea.vmem %s468, 163
    %v551 = vld [vmem:[%s550] ss:$2 sm:$0x3f]
    %v552 = vmul.f32 %v541, %v190
    %v553 = vmul.f32 %v543, %v190
    %v554 = vmul.f32 %v545, %v190
    %v555 = vmul.f32 %v547, %v190
    %v556 = vmul.f32 %v549, %v190
    %v557 = vmul.f32 %v551, %v190
    %v558 = vadd.f32 %v534, %v552
    %v559 = vadd.f32 %v535, %v553
    %v560 = vadd.f32 %v536, %v554
    %v561 = vadd.f32 %v537, %v555
    %v562 = vadd.f32 %v538, %v556
    %v563 = vadd.f32 %v539, %v557
    %s564 = scalar_lea.vmem %s468, 4
    %v565 = vld [vmem:[%s564] ss:$2 sm:$0x3f]
    %s566 = scalar_lea.vmem %s468, 36
    %v567 = vld [vmem:[%s566] ss:$2 sm:$0x3f]
    %s568 = scalar_lea.vmem %s468, 68
    %v569 = vld [vmem:[%s568] ss:$2 sm:$0x3f]
    %s570 = scalar_lea.vmem %s468, 100
    %v571 = vld [vmem:[%s570] ss:$2 sm:$0x3f]
    %s572 = scalar_lea.vmem %s468, 132
    %v573 = vld [vmem:[%s572] ss:$2 sm:$0x3f]
    %s574 = scalar_lea.vmem %s468, 164
    %v575 = vld [vmem:[%s574] ss:$2 sm:$0x3f]
    %v576 = vmul.f32 %v565, %v196
    %v577 = vmul.f32 %v567, %v196
    %v578 = vmul.f32 %v569, %v196
    %v579 = vmul.f32 %v571, %v196
    %v580 = vmul.f32 %v573, %v196
    %v581 = vmul.f32 %v575, %v196
    %v582 = vadd.f32 %v558, %v576
    %v583 = vadd.f32 %v559, %v577
    %v584 = vadd.f32 %v560, %v578
    %v585 = vadd.f32 %v561, %v579
    %v586 = vadd.f32 %v562, %v580
    %v587 = vadd.f32 %v563, %v581
    %s588 = scalar_lea.vmem %s1, 48
    %v589 = vld [vmem:[%s588] ss:$2 sm:$0x3f]
    %s590 = scalar_lea.vmem %s588, 32
    %v591 = vld [vmem:[%s590] ss:$2 sm:$0x3f]
    %s592 = scalar_lea.vmem %s588, 64
    %v593 = vld [vmem:[%s592] ss:$2 sm:$0x3f]
    %s594 = scalar_lea.vmem %s588, 96
    %v595 = vld [vmem:[%s594] ss:$2 sm:$0x3f]
    %s596 = scalar_lea.vmem %s588, 128
    %v597 = vld [vmem:[%s596] ss:$2 sm:$0x3f]
    %s598 = scalar_lea.vmem %s588, 160
    %v599 = vld [vmem:[%s598] ss:$2 sm:$0x3f]
    %v600 = vmul.f32 %v589, %v162
    %v601 = vmul.f32 %v591, %v162
    %v602 = vmul.f32 %v593, %v162
    %v603 = vmul.f32 %v595, %v162
    %v604 = vmul.f32 %v597, %v162
    %v605 = vmul.f32 %v599, %v162
    %v606 = vadd.f32 %v582, %v600
    %v607 = vadd.f32 %v583, %v601
    %v608 = vadd.f32 %v584, %v602
    %v609 = vadd.f32 %v585, %v603
    %v610 = vadd.f32 %v586, %v604
    %v611 = vadd.f32 %v587, %v605
    %s612 = scalar_lea.vmem %s588, 1
    %v613 = vld [vmem:[%s612] ss:$2 sm:$0x3f]
    %s614 = scalar_lea.vmem %s588, 33
    %v615 = vld [vmem:[%s614] ss:$2 sm:$0x3f]
    %s616 = scalar_lea.vmem %s588, 65
    %v617 = vld [vmem:[%s616] ss:$2 sm:$0x3f]
    %s618 = scalar_lea.vmem %s588, 97
    %v619 = vld [vmem:[%s618] ss:$2 sm:$0x3f]
    %s620 = scalar_lea.vmem %s588, 129
    %v621 = vld [vmem:[%s620] ss:$2 sm:$0x3f]
    %s622 = scalar_lea.vmem %s588, 161
    %v623 = vld [vmem:[%s622] ss:$2 sm:$0x3f]
    %v624 = vmul.f32 %v613, %v155
    %v625 = vmul.f32 %v615, %v155
    %v626 = vmul.f32 %v617, %v155
    %v627 = vmul.f32 %v619, %v155
    %v628 = vmul.f32 %v621, %v155
    %v629 = vmul.f32 %v623, %v155
    %v630 = vadd.f32 %v606, %v624
    %v631 = vadd.f32 %v607, %v625
    %v632 = vadd.f32 %v608, %v626
    %v633 = vadd.f32 %v609, %v627
    %v634 = vadd.f32 %v610, %v628
    %v635 = vadd.f32 %v611, %v629
    %s636 = scalar_lea.vmem %s588, 2
    %v637 = vld [vmem:[%s636] ss:$2 sm:$0x3f]
    %s638 = scalar_lea.vmem %s588, 34
    %v639 = vld [vmem:[%s638] ss:$2 sm:$0x3f]
    %s640 = scalar_lea.vmem %s588, 66
    %v641 = vld [vmem:[%s640] ss:$2 sm:$0x3f]
    %s642 = scalar_lea.vmem %s588, 98
    %v643 = vld [vmem:[%s642] ss:$2 sm:$0x3f]
    %s644 = scalar_lea.vmem %s588, 130
    %v645 = vld [vmem:[%s644] ss:$2 sm:$0x3f]
    %s646 = scalar_lea.vmem %s588, 162
    %v647 = vld [vmem:[%s646] ss:$2 sm:$0x3f]
    %v648 = vmul.f32 %v637, %v205
    %v649 = vmul.f32 %v639, %v205
    %v650 = vmul.f32 %v641, %v205
    %v651 = vmul.f32 %v643, %v205
    %v652 = vmul.f32 %v645, %v205
    %v653 = vmul.f32 %v647, %v205
    %v654 = vadd.f32 %v630, %v648
    %v655 = vadd.f32 %v631, %v649
    %v656 = vadd.f32 %v632, %v650
    %v657 = vadd.f32 %v633, %v651
    %v658 = vadd.f32 %v634, %v652
    %v659 = vadd.f32 %v635, %v653
    %s660 = scalar_lea.vmem %s588, 3
    %v661 = vld [vmem:[%s660] ss:$2 sm:$0x3f]
    %s662 = scalar_lea.vmem %s588, 35
    %v663 = vld [vmem:[%s662] ss:$2 sm:$0x3f]
    %s664 = scalar_lea.vmem %s588, 67
    %v665 = vld [vmem:[%s664] ss:$2 sm:$0x3f]
    %s666 = scalar_lea.vmem %s588, 99
    %v667 = vld [vmem:[%s666] ss:$2 sm:$0x3f]
    %s668 = scalar_lea.vmem %s588, 131
    %v669 = vld [vmem:[%s668] ss:$2 sm:$0x3f]
    %s670 = scalar_lea.vmem %s588, 163
    %v671 = vld [vmem:[%s670] ss:$2 sm:$0x3f]
    %v672 = vmul.f32 %v661, %v140
    %v673 = vmul.f32 %v663, %v140
    %v674 = vmul.f32 %v665, %v140
    %v675 = vmul.f32 %v667, %v140
    %v676 = vmul.f32 %v669, %v140
    %v677 = vmul.f32 %v671, %v140
    %v678 = vadd.f32 %v654, %v672
    %v679 = vadd.f32 %v655, %v673
    %v680 = vadd.f32 %v656, %v674
    %v681 = vadd.f32 %v657, %v675
    %v682 = vadd.f32 %v658, %v676
    %v683 = vadd.f32 %v659, %v677
    %s684 = scalar_lea.vmem %s588, 4
    %v685 = vld [vmem:[%s684] ss:$2 sm:$0x3f]
    %s686 = scalar_lea.vmem %s588, 36
    %v687 = vld [vmem:[%s686] ss:$2 sm:$0x3f]
    %s688 = scalar_lea.vmem %s588, 68
    %v689 = vld [vmem:[%s688] ss:$2 sm:$0x3f]
    %s690 = scalar_lea.vmem %s588, 100
    %v691 = vld [vmem:[%s690] ss:$2 sm:$0x3f]
    %s692 = scalar_lea.vmem %s588, 132
    %v693 = vld [vmem:[%s692] ss:$2 sm:$0x3f]
    %s694 = scalar_lea.vmem %s588, 164
    %v695 = vld [vmem:[%s694] ss:$2 sm:$0x3f]
    %v696 = vmul.f32 %v685, %v133
    %v697 = vmul.f32 %v687, %v133
    %v698 = vmul.f32 %v689, %v133
    %v699 = vmul.f32 %v691, %v133
    %v700 = vmul.f32 %v693, %v133
    %v701 = vmul.f32 %v695, %v133
    %v702 = vadd.f32 %v678, %v696
    %v703 = vadd.f32 %v679, %v697
    %v704 = vadd.f32 %v680, %v698
    %v705 = vadd.f32 %v681, %v699
    %v706 = vadd.f32 %v682, %v700
    %v707 = vadd.f32 %v683, %v701
    %s708 = scalar_lea.vmem %s1, 64
    %v709 = vld [vmem:[%s708] ss:$2 sm:$0x3f]
    %s710 = scalar_lea.vmem %s708, 32
    %v711 = vld [vmem:[%s710] ss:$2 sm:$0x3f]
    %s712 = scalar_lea.vmem %s708, 64
    %v713 = vld [vmem:[%s712] ss:$2 sm:$0x3f]
    %s714 = scalar_lea.vmem %s708, 96
    %v715 = vld [vmem:[%s714] ss:$2 sm:$0x3f]
    %s716 = scalar_lea.vmem %s708, 128
    %v717 = vld [vmem:[%s716] ss:$2 sm:$0x3f]
    %s718 = scalar_lea.vmem %s708, 160
    %v719 = vld [vmem:[%s718] ss:$2 sm:$0x3f]
    %v720 = vmul.f32 %v709, %v126
    %v721 = vmul.f32 %v711, %v126
    %v722 = vmul.f32 %v713, %v126
    %v723 = vmul.f32 %v715, %v126
    %v724 = vmul.f32 %v717, %v126
    %v725 = vmul.f32 %v719, %v126
    %v726 = vadd.f32 %v702, %v720
    %v727 = vadd.f32 %v703, %v721
    %v728 = vadd.f32 %v704, %v722
    %v729 = vadd.f32 %v705, %v723
    %v730 = vadd.f32 %v706, %v724
    %v731 = vadd.f32 %v707, %v725
    %s732 = scalar_lea.vmem %s708, 1
    %v733 = vld [vmem:[%s732] ss:$2 sm:$0x3f]
    %s734 = scalar_lea.vmem %s708, 33
    %v735 = vld [vmem:[%s734] ss:$2 sm:$0x3f]
    %s736 = scalar_lea.vmem %s708, 65
    %v737 = vld [vmem:[%s736] ss:$2 sm:$0x3f]
    %s738 = scalar_lea.vmem %s708, 97
    %v739 = vld [vmem:[%s738] ss:$2 sm:$0x3f]
    %s740 = scalar_lea.vmem %s708, 129
    %v741 = vld [vmem:[%s740] ss:$2 sm:$0x3f]
    %s742 = scalar_lea.vmem %s708, 161
    %v743 = vld [vmem:[%s742] ss:$2 sm:$0x3f]
    %v744 = vmul.f32 %v733, %v118
    %v745 = vmul.f32 %v735, %v118
    %v746 = vmul.f32 %v737, %v118
    %v747 = vmul.f32 %v739, %v118
    %v748 = vmul.f32 %v741, %v118
    %v749 = vmul.f32 %v743, %v118
    %v750 = vadd.f32 %v726, %v744
    %v751 = vadd.f32 %v727, %v745
    %v752 = vadd.f32 %v728, %v746
    %v753 = vadd.f32 %v729, %v747
    %v754 = vadd.f32 %v730, %v748
    %v755 = vadd.f32 %v731, %v749
    %s756 = scalar_lea.vmem %s708, 2
    %v757 = vld [vmem:[%s756] ss:$2 sm:$0x3f]
    %s758 = scalar_lea.vmem %s708, 34
    %v759 = vld [vmem:[%s758] ss:$2 sm:$0x3f]
    %s760 = scalar_lea.vmem %s708, 66
    %v761 = vld [vmem:[%s760] ss:$2 sm:$0x3f]
    %s762 = scalar_lea.vmem %s708, 98
    %v763 = vld [vmem:[%s762] ss:$2 sm:$0x3f]
    %s764 = scalar_lea.vmem %s708, 130
    %v765 = vld [vmem:[%s764] ss:$2 sm:$0x3f]
    %s766 = scalar_lea.vmem %s708, 162
    %v767 = vld [vmem:[%s766] ss:$2 sm:$0x3f]
    %v768 = vmul.f32 %v757, %v216
    %v769 = vmul.f32 %v759, %v216
    %v770 = vmul.f32 %v761, %v216
    %v771 = vmul.f32 %v763, %v216
    %v772 = vmul.f32 %v765, %v216
    %v773 = vmul.f32 %v767, %v216
    %v774 = vadd.f32 %v750, %v768
    %v775 = vadd.f32 %v751, %v769
    %v776 = vadd.f32 %v752, %v770
    %v777 = vadd.f32 %v753, %v771
    %v778 = vadd.f32 %v754, %v772
    %v779 = vadd.f32 %v755, %v773
    %s780 = scalar_lea.vmem %s708, 3
    %v781 = vld [vmem:[%s780] ss:$2 sm:$0x3f]
    %s782 = scalar_lea.vmem %s708, 35
    %v783 = vld [vmem:[%s782] ss:$2 sm:$0x3f]
    %s784 = scalar_lea.vmem %s708, 67
    %v785 = vld [vmem:[%s784] ss:$2 sm:$0x3f]
    %s786 = scalar_lea.vmem %s708, 99
    %v787 = vld [vmem:[%s786] ss:$2 sm:$0x3f]
    %s788 = scalar_lea.vmem %s708, 131
    %v789 = vld [vmem:[%s788] ss:$2 sm:$0x3f]
    %s790 = scalar_lea.vmem %s708, 163
    %v791 = vld [vmem:[%s790] ss:$2 sm:$0x3f]
    %v792 = vmul.f32 %v781, %v101
    %v793 = vmul.f32 %v783, %v101
    %v794 = vmul.f32 %v785, %v101
    %v795 = vmul.f32 %v787, %v101
    %v796 = vmul.f32 %v789, %v101
    %v797 = vmul.f32 %v791, %v101
    %v798 = vadd.f32 %v774, %v792
    %v799 = vadd.f32 %v775, %v793
    %v800 = vadd.f32 %v776, %v794
    %v801 = vadd.f32 %v777, %v795
    %v802 = vadd.f32 %v778, %v796
    %v803 = vadd.f32 %v779, %v797
    %s804 = scalar_lea.vmem %s708, 4
    %v805 = vld [vmem:[%s804] ss:$2 sm:$0x3f]
    %s806 = scalar_lea.vmem %s708, 36
    %v807 = vld [vmem:[%s806] ss:$2 sm:$0x3f]
    %s808 = scalar_lea.vmem %s708, 68
    %v809 = vld [vmem:[%s808] ss:$2 sm:$0x3f]
    %s810 = scalar_lea.vmem %s708, 100
    %v811 = vld [vmem:[%s810] ss:$2 sm:$0x3f]
    %s812 = scalar_lea.vmem %s708, 132
    %v813 = vld [vmem:[%s812] ss:$2 sm:$0x3f]
    %s814 = scalar_lea.vmem %s708, 164
    %v815 = vld [vmem:[%s814] ss:$2 sm:$0x3f]
    %v816 = vmul.f32 %v805, %v94
    %v817 = vmul.f32 %v807, %v94
    %v818 = vmul.f32 %v809, %v94
    %v819 = vmul.f32 %v811, %v94
    %v820 = vmul.f32 %v813, %v94
    %v821 = vmul.f32 %v815, %v94
    %v822 = vadd.f32 %v798, %v816
    %v823 = vadd.f32 %v799, %v817
    %v824 = vadd.f32 %v800, %v818
    %v825 = vadd.f32 %v801, %v819
    %v826 = vadd.f32 %v802, %v820
    %v827 = vadd.f32 %v803, %v821
    %v828 = vmul.f32 %v822, %v234
    %v829 = vmul.f32 %v823, %v234
    %v830 = vmul.f32 %v824, %v234
    %v831 = vmul.f32 %v825, %v234
    %v832 = vmul.f32 %v826, %v234
    %v833 = vmul.f32 %v827, %v234
    %vm834 = vcmask 62464
    %835 = vst.msk [vmem:[%s2] sm:$0x3f] %vm834, %v828
    %836 = vst.msk [vmem:[%s2 + $0x8] sm:$0x3f] %vm834, %v829
    %837 = vst.msk [vmem:[%s2 + $0x10] sm:$0x3f] %vm834, %v830
    %838 = vst.msk [vmem:[%s2 + $0x18] sm:$0x3f] %vm834, %v831
    %839 = vst.msk [vmem:[%s2 + $0x20] sm:$0x3f] %vm834, %v832
    %840 = vst.msk [vmem:[%s2 + $0x28] sm:$0x3f] %vm834, %v833
    // Predicated region
    $region14: #{gaussian_kernel_forward.1} parent=1 // pred_check
      _
    $region15: #{gaussian_kernel_forward.1} parent=1 // pred_check_branch
      %842 = sbr.rel (0) target = $region17
    $region16: #{gaussian_kernel_forward.1} parent=1 // pred_region
      _
    $region17: #{gaussian_kernel_forward.1} parent=1 // pred_fallthru
      _
    // Predicated region
    $region18: #{gaussian_kernel_forward.1} parent=1 // pred_check
      _
    $region19: #{gaussian_kernel_forward.1} parent=1 // pred_check_branch
      %844 = sbr.rel (0) target = $region21
    $region20: #{gaussian_kernel_forward.1} parent=1 // pred_region
      %846 = vsyncadd [#allocation3], 0
      %s848 = sshll.u32 [#allocation5], 4
      %s849 = int_to_ptr.vmem [resolvable:$true] %s848
      %s850 = sshll.u32 %s3, 4
      %s851 = int_to_ptr.hbm [resolvable:$true] %s850
      %853 = dma.vmem_to_hbm [thread:$0]  %s849, 128, %s851, [#allocation3]
    $region21: #{gaussian_kernel_forward.1} parent=1 // pred_fallthru
      _
    // Predicated region
    $region22: #{gaussian_kernel_forward.1} parent=1 // pred_check
      _
    $region23: #{gaussian_kernel_forward.1} parent=1 // pred_check_branch
      %855 = sbr.rel (0) target = $region25
    $region24: #{gaussian_kernel_forward.1} parent=1 // pred_region
      _
    $region25: #{gaussian_kernel_forward.1} parent=1 // pred_fallthru
      _
    // Predicated region
    $region26: #{gaussian_kernel_forward.1} parent=1 // pred_check
      _
    $region27: #{gaussian_kernel_forward.1} parent=1 // pred_check_branch
      %857 = sbr.rel (0) target = $region29
    $region28: #{gaussian_kernel_forward.1} parent=1 // pred_region
      %859 = dma.done [#allocation3], 128
    $region29: #{gaussian_kernel_forward.1} parent=1 // pred_fallthru
      _
    %860 = vsyncpa [#allocation3], 1
    %861 = vsyncpa [#allocation4], 1

</llo_original>
